<compile_context>
chip_gen: v6e
topology: v6e:2x2x1
jax: 0.10.0
libtpu: 0.0.40
codegen_flags: <defaults>
</compile_context>

<pallas_src>
import jax
import jax.numpy as jnp
from jax import lax
from jax.experimental import pallas as pl
from jax.experimental.pallas import tpu as pltpu

# (Cin, Cout, K, dilation) per layer.
LAYERS = [(1, 4, 2, 1), (4, 8, 4, 2), (8, 16, 8, 4)]
RECEPTIVE_M1 = sum((k - 1) * d for (_, _, k, d) in LAYERS)   # 35 = receptive field - 1

# f32 keeps the 1e-5 check vs. the f32 reference; set to jnp.bfloat16 for the
# MXU-native fast path on v5e/v6e/v7x (then loosen the tolerance).
MXU_DTYPE = jnp.float32


def tdnn_kernel(x_ref, w1_ref, b1_ref, w2_ref, b2_ref, w3_ref, b3_ref, o_ref):
    """One batch tile (block_b lane-packed elements) per grid step.

    x_ref : (1, 1, W0)   lane-packed inputs, element e at lanes [e*L, e*L+L)
    w1_ref: (4, 2)       layer-1 weights with the Cin=1 dim squeezed
    w2_ref: (4, 8, 4)    layer-2 weights as (K, Cout, Cin) contiguous tap slabs
    w3_ref: (8, 16, 8)   layer-3 weights as (K, Cout, Cin)
    b*_ref: (Cout, 1)    biases
    o_ref : (1, 16, W0-35) lane-packed outputs, element e at lanes [e*L, e*L+L)
    """
    w0 = x_ref.shape[-1]
    l1 = w0 - 1        # layer-1 output width
    l2 = w0 - 7        # layer-2 output width
    l3 = w0 - 35       # layer-3 output width == block_b * L

    x = x_ref[0]                                          # (1, W0) f32

    # ---- layer 1: Conv1d(1,4,k=2,d=1) + ReLU --------------------------------
    # Degenerate Cin=1 contraction -> 2-tap broadcast FMA on the VPU.
    w1 = w1_ref[...]                                      # (4, 2)
    h = w1[:, 0:1] * x[:, 0:l1] + w1[:, 1:2] * x[:, 1:1 + l1]
    h = jnp.maximum(h + b1_ref[...], 0.0)                 # (4, l1)

    # ---- layers 2/3: per-tap full-width contractions on the MXU -------------
    def conv_relu(h, w_ref, b_ref, dilation, lout):
        k_sz, cout, _ = w_ref.shape
        acc = jnp.zeros((cout, lout), jnp.float32)
        for k in range(k_sz):                             # static unroll: 4 / 8 taps
            xs = h[:, k * dilation: k * dilation + lout]  # (Cin, lout) lane-shifted slice
            wk = w_ref[k]                                 # (Cout, Cin) contiguous slab
            acc = acc + jnp.dot(wk.astype(MXU_DTYPE), xs.astype(MXU_DTYPE),
                                preferred_element_type=jnp.float32)
        return jnp.maximum(acc + b_ref[...], 0.0)         # bias + ReLU

    h = conv_relu(h, w2_ref, b2_ref, dilation=2, lout=l2)   # (8,  l2)
    h = conv_relu(h, w3_ref, b3_ref, dilation=4, lout=l3)   # (16, l3)

    o_ref[0] = h.astype(o_ref.dtype)                      # lane-dense (16, block_b*L) store


def _choose_block_b(n):
    """Batch elements packed into one grid step.

    Large tiles amortize the ~0.35us/grid-step overhead; keep >=2 grid steps
    whenever n >= 2 (v7x has 2 TensorCores), keep the tile even so the output
    block stays 128-lane aligned, and cap it so double-buffered blocks stay far
    below the 16 MiB (v5e) default scoped-VMEM limit.
    """
    if n <= 2:
        return 1
    b = min(128, (n + 1) // 2)
    if b >= 2:
        b -= b % 2
    return max(b, 1)


def tdnn_forward(x, params, block_b=None):
    w1, b1, w2, b2, w3, b3 = params
    n, cin0, l = x.shape
    assert cin0 == 1 and l > RECEPTIVE_M1
    lout_valid = l - RECEPTIVE_M1                         # 64 - 35 = 29
    cout_final = LAYERS[-1][1]                            # 16

    if block_b is None:
        block_b = _choose_block_b(n)
    g = -(-n // block_b)                                  # grid steps
    n_pad = g * block_b

    # Lane-packed input rows: one (1, block_b*L + 35) slab per grid step.
    # Each element keeps stride L; the trailing 35 zero lanes keep the deepest
    # tap of the last element in bounds.  Valid output columns only ever read
    # in-element data, so padding never corrupts them.
    x2 = x.reshape(n, l)                                  # squeeze the dead Cin=1 dim
    if n_pad != n:
        x2 = jnp.pad(x2, ((0, n_pad - n), (0, 0)))
    w0 = block_b * l + RECEPTIVE_M1
    x_packed = jnp.pad(x2.reshape(g, 1, block_b * l),
                       ((0, 0), (0, 0), (0, RECEPTIVE_M1)))          # (g, 1, w0)

    # Weight layout changes done once in the XLA wrapper.
    w1s = w1[:, 0, :]                                     # (4, 2)
    w2t = jnp.transpose(w2, (2, 0, 1))                    # (K=4, Cout=8, Cin=4)
    w3t = jnp.transpose(w3, (2, 0, 1))                    # (K=8, Cout=16, Cin=8)

    w3_len = block_b * l                                  # packed output width per block

    def full_spec(a):
        # Whole (tiny) array resident in VMEM, same block every grid step.
        return pl.BlockSpec(a.shape, lambda b: (0,) * a.ndim)

    out = pl.pallas_call(
        tdnn_kernel,
        out_shape=jax.ShapeDtypeStruct((g, cout_final, w3_len), jnp.float32),
        grid=(g,),
        in_specs=[
            pl.BlockSpec((1, 1, w0), lambda b: (b, 0, 0)),
            full_spec(w1s), full_spec(b1),
            full_spec(w2t), full_spec(b2),
            full_spec(w3t), full_spec(b3),
        ],
        out_specs=pl.BlockSpec((1, cout_final, w3_len), lambda b: (b, 0, 0)),
        compiler_params=pltpu.CompilerParams(
            dimension_semantics=("parallel",),            # shards batch tiles across TCs
        ),
    )(x_packed, w1s, b1, w2t, b2, w3t, b3)

    # Un-pack lanes -> batch and drop the per-element padded tail columns.
    out = out.reshape(g, cout_final, block_b, l).transpose(0, 2, 1, 3)
    out = out.reshape(n_pad, cout_final, l)
    return out[:n, :, :lout_valid]


def tdnn_reference(x, params):
    """Pure-JAX reference using lax.conv_general_dilated (matches PyTorch Conv1d)."""
    w1, b1, w2, b2, w3, b3 = params
    h = x
    for (w, b), (_, _, _, d) in zip([(w1, b1), (w2, b2), (w3, b3)], LAYERS):
        h = lax.conv_general_dilated(
            h, w, window_strides=(1,), padding="VALID", rhs_dilation=(d,),
            dimension_numbers=("NCH", "OIH", "NCH"))
        h = jnp.maximum(h + b[None, :, :], 0.0)
    return h


def init_params(key):
    params = []
    for (cin, cout, k, _) in LAYERS:
        key, kw, kb = jax.random.split(key, 3)
        # Deterministic synthetic init (uniform in +/- 1/sqrt(fan_in), like nn.Conv1d).
        bound = 1.0 / jnp.sqrt(cin * k)
        w = jax.random.uniform(kw, (cout, cin, k), jnp.float32, -bound, bound)
        b = jax.random.uniform(kb, (cout, 1), jnp.float32, -bound, bound)
        params += [w, b]
    return tuple(params)


if __name__ == "__main__":
    key = jax.random.PRNGKey(0)
    key, kx = jax.random.split(key)

    N, L = 2, 64                        # input: (batch=2, channels=1, length=64)
    x = jax.random.normal(kx, (N, 1, L), jnp.float32)
    params = init_params(key)

    out = jax.block_until_ready(tdnn_forward(x, params))

    ref = tdnn_reference(x, params)
    assert out.shape == ref.shape, (out.shape, ref.shape)
    assert jnp.allclose(out, ref, atol=1e-5, rtol=1e-5), "mismatch vs reference"

    print("KERNEL_OK")
</pallas_src>

<mosaic_0001>
module attributes {stable_mosaic.version = 11 : i64} {
  func.func @tdnn_kernel(%arg0: i32, %arg1: memref<1x1x99xf32, #tpu.memory_space<vmem>>, %arg2: memref<4x2xf32, #tpu.memory_space<vmem>>, %arg3: memref<4x1xf32, #tpu.memory_space<vmem>>, %arg4: memref<4x8x4xf32, #tpu.memory_space<vmem>>, %arg5: memref<8x1xf32, #tpu.memory_space<vmem>>, %arg6: memref<8x16x8xf32, #tpu.memory_space<vmem>>, %arg7: memref<16x1xf32, #tpu.memory_space<vmem>>, %arg8: memref<1x16x64xf32, #tpu.memory_space<vmem>>) attributes {dimension_semantics = [#tpu.dimension_semantics<parallel>], iteration_bounds = array<i64: 2>, scalar_prefetch = 0 : i64, scratch_operands = 0 : i64, tpu.core_type = #tpu.core_type<tc>, window_params = [{transform_indices = @transform_0, window_bounds = array<i64: 1, 1, 99>}, {pipeline_mode = #tpu.pipeline_mode<synchronous>, transform_indices = @transform_1, window_bounds = array<i64: 4, 2>}, {pipeline_mode = #tpu.pipeline_mode<synchronous>, transform_indices = @transform_2, window_bounds = array<i64: 4, 1>}, {pipeline_mode = #tpu.pipeline_mode<synchronous>, transform_indices = @transform_3, window_bounds = array<i64: 4, 8, 4>}, {pipeline_mode = #tpu.pipeline_mode<synchronous>, transform_indices = @transform_4, window_bounds = array<i64: 8, 1>}, {pipeline_mode = #tpu.pipeline_mode<synchronous>, transform_indices = @transform_5, window_bounds = array<i64: 8, 16, 8>}, {pipeline_mode = #tpu.pipeline_mode<synchronous>, transform_indices = @transform_6, window_bounds = array<i64: 16, 1>}, {transform_indices = @transform_7, window_bounds = array<i64: 1, 16, 64>}]} {
    %c0 = arith.constant 0 : index
    %c0_0 = arith.constant 0 : index
    %c0_1 = arith.constant 0 : index
    %0 = vector.load %arg1[%c0, %c0_0, %c0_1] : memref<1x1x99xf32, #tpu.memory_space<vmem>>, vector<1x1x99xf32>
    %1 = vector.shape_cast %0 : vector<1x1x99xf32> to vector<1x99xf32>
    %c0_2 = arith.constant 0 : index
    %c0_3 = arith.constant 0 : index
    %2 = vector.load %arg2[%c0_2, %c0_3] : memref<4x2xf32, #tpu.memory_space<vmem>>, vector<4x2xf32>
    %3 = vector.extract_strided_slice %2 {offsets = [0, 0], sizes = [4, 1], strides = [1, 1]} : vector<4x2xf32> to vector<4x1xf32>
    %4 = vector.extract_strided_slice %1 {offsets = [0, 0], sizes = [1, 98], strides = [1, 1]} : vector<1x99xf32> to vector<1x98xf32>
    %5 = vector.broadcast %3 : vector<4x1xf32> to vector<4x98xf32>
    %6 = vector.broadcast %4 : vector<1x98xf32> to vector<4x98xf32>
    %7 = arith.mulf %5, %6 : vector<4x98xf32>
    %8 = vector.extract_strided_slice %2 {offsets = [0, 1], sizes = [4, 1], strides = [1, 1]} : vector<4x2xf32> to vector<4x1xf32>
    %9 = vector.extract_strided_slice %1 {offsets = [0, 1], sizes = [1, 98], strides = [1, 1]} : vector<1x99xf32> to vector<1x98xf32>
    %10 = vector.broadcast %8 : vector<4x1xf32> to vector<4x98xf32>
    %11 = vector.broadcast %9 : vector<1x98xf32> to vector<4x98xf32>
    %12 = arith.mulf %10, %11 : vector<4x98xf32>
    %13 = arith.addf %7, %12 : vector<4x98xf32>
    %c0_4 = arith.constant 0 : index
    %c0_5 = arith.constant 0 : index
    %14 = vector.load %arg3[%c0_4, %c0_5] : memref<4x1xf32, #tpu.memory_space<vmem>>, vector<4x1xf32>
    %15 = vector.broadcast %14 : vector<4x1xf32> to vector<4x98xf32>
    %16 = arith.addf %13, %15 : vector<4x98xf32>
    %cst = arith.constant 0.000000e+00 : f32
    %17 = vector.broadcast %cst : f32 to vector<4x98xf32>
    %18 = arith.maximumf %16, %17 : vector<4x98xf32>
    %cst_6 = arith.constant 0.000000e+00 : f32
    %19 = vector.broadcast %cst_6 : f32 to vector<8x92xf32>
    %20 = vector.extract_strided_slice %18 {offsets = [0, 0], sizes = [4, 92], strides = [1, 1]} : vector<4x98xf32> to vector<4x92xf32>
    %c0_7 = arith.constant 0 : index
    %c0_8 = arith.constant 0 : index
    %c0_9 = arith.constant 0 : index
    %21 = vector.load %arg4[%c0_7, %c0_8, %c0_9] : memref<4x8x4xf32, #tpu.memory_space<vmem>>, vector<1x8x4xf32>
    %22 = vector.shape_cast %21 : vector<1x8x4xf32> to vector<8x4xf32>
    %cst_10 = arith.constant dense<0.000000e+00> : vector<8x92xf32>
    %23 = tpu.matmul %22, %20, %cst_10 {dimension_numbers = #tpu.dot_dimension_numbers<[1], [0], [0], [1], [0, 0, 1, 1], [], []>} : vector<8x4xf32>, vector<4x92xf32>, vector<8x92xf32> -> vector<8x92xf32>
    %24 = arith.addf %19, %23 : vector<8x92xf32>
    %25 = vector.extract_strided_slice %18 {offsets = [0, 2], sizes = [4, 92], strides = [1, 1]} : vector<4x98xf32> to vector<4x92xf32>
    %c1 = arith.constant 1 : index
    %c0_11 = arith.constant 0 : index
    %c0_12 = arith.constant 0 : index
    %26 = vector.load %arg4[%c1, %c0_11, %c0_12] : memref<4x8x4xf32, #tpu.memory_space<vmem>>, vector<1x8x4xf32>
    %27 = vector.shape_cast %26 : vector<1x8x4xf32> to vector<8x4xf32>
    %cst_13 = arith.constant dense<0.000000e+00> : vector<8x92xf32>
    %28 = tpu.matmul %27, %25, %cst_13 {dimension_numbers = #tpu.dot_dimension_numbers<[1], [0], [0], [1], [0, 0, 1, 1], [], []>} : vector<8x4xf32>, vector<4x92xf32>, vector<8x92xf32> -> vector<8x92xf32>
    %29 = arith.addf %24, %28 : vector<8x92xf32>
    %30 = vector.extract_strided_slice %18 {offsets = [0, 4], sizes = [4, 92], strides = [1, 1]} : vector<4x98xf32> to vector<4x92xf32>
    %c2 = arith.constant 2 : index
    %c0_14 = arith.constant 0 : index
    %c0_15 = arith.constant 0 : index
    %31 = vector.load %arg4[%c2, %c0_14, %c0_15] : memref<4x8x4xf32, #tpu.memory_space<vmem>>, vector<1x8x4xf32>
    %32 = vector.shape_cast %31 : vector<1x8x4xf32> to vector<8x4xf32>
    %cst_16 = arith.constant dense<0.000000e+00> : vector<8x92xf32>
    %33 = tpu.matmul %32, %30, %cst_16 {dimension_numbers = #tpu.dot_dimension_numbers<[1], [0], [0], [1], [0, 0, 1, 1], [], []>} : vector<8x4xf32>, vector<4x92xf32>, vector<8x92xf32> -> vector<8x92xf32>
    %34 = arith.addf %29, %33 : vector<8x92xf32>
    %35 = vector.extract_strided_slice %18 {offsets = [0, 6], sizes = [4, 92], strides = [1, 1]} : vector<4x98xf32> to vector<4x92xf32>
    %c3 = arith.constant 3 : index
    %c0_17 = arith.constant 0 : index
    %c0_18 = arith.constant 0 : index
    %36 = vector.load %arg4[%c3, %c0_17, %c0_18] : memref<4x8x4xf32, #tpu.memory_space<vmem>>, vector<1x8x4xf32>
    %37 = vector.shape_cast %36 : vector<1x8x4xf32> to vector<8x4xf32>
    %cst_19 = arith.constant dense<0.000000e+00> : vector<8x92xf32>
    %38 = tpu.matmul %37, %35, %cst_19 {dimension_numbers = #tpu.dot_dimension_numbers<[1], [0], [0], [1], [0, 0, 1, 1], [], []>} : vector<8x4xf32>, vector<4x92xf32>, vector<8x92xf32> -> vector<8x92xf32>
    %39 = arith.addf %34, %38 : vector<8x92xf32>
    %c0_20 = arith.constant 0 : index
    %c0_21 = arith.constant 0 : index
    %40 = vector.load %arg5[%c0_20, %c0_21] : memref<8x1xf32, #tpu.memory_space<vmem>>, vector<8x1xf32>
    %41 = vector.broadcast %40 : vector<8x1xf32> to vector<8x92xf32>
    %42 = arith.addf %39, %41 : vector<8x92xf32>
    %cst_22 = arith.constant 0.000000e+00 : f32
    %43 = vector.broadcast %cst_22 : f32 to vector<8x92xf32>
    %44 = arith.maximumf %42, %43 : vector<8x92xf32>
    %cst_23 = arith.constant 0.000000e+00 : f32
    %45 = vector.broadcast %cst_23 : f32 to vector<16x64xf32>
    %46 = vector.extract_strided_slice %44 {offsets = [0, 0], sizes = [8, 64], strides = [1, 1]} : vector<8x92xf32> to vector<8x64xf32>
    %c0_24 = arith.constant 0 : index
    %c0_25 = arith.constant 0 : index
    %c0_26 = arith.constant 0 : index
    %47 = vector.load %arg6[%c0_24, %c0_25, %c0_26] : memref<8x16x8xf32, #tpu.memory_space<vmem>>, vector<1x16x8xf32>
    %48 = vector.shape_cast %47 : vector<1x16x8xf32> to vector<16x8xf32>
    %cst_27 = arith.constant dense<0.000000e+00> : vector<16x64xf32>
    %49 = tpu.matmul %48, %46, %cst_27 {dimension_numbers = #tpu.dot_dimension_numbers<[1], [0], [0], [1], [0, 0, 1, 1], [], []>} : vector<16x8xf32>, vector<8x64xf32>, vector<16x64xf32> -> vector<16x64xf32>
    %50 = arith.addf %45, %49 : vector<16x64xf32>
    %51 = vector.extract_strided_slice %44 {offsets = [0, 4], sizes = [8, 64], strides = [1, 1]} : vector<8x92xf32> to vector<8x64xf32>
    %c1_28 = arith.constant 1 : index
    %c0_29 = arith.constant 0 : index
    %c0_30 = arith.constant 0 : index
    %52 = vector.load %arg6[%c1_28, %c0_29, %c0_30] : memref<8x16x8xf32, #tpu.memory_space<vmem>>, vector<1x16x8xf32>
    %53 = vector.shape_cast %52 : vector<1x16x8xf32> to vector<16x8xf32>
    %cst_31 = arith.constant dense<0.000000e+00> : vector<16x64xf32>
    %54 = tpu.matmul %53, %51, %cst_31 {dimension_numbers = #tpu.dot_dimension_numbers<[1], [0], [0], [1], [0, 0, 1, 1], [], []>} : vector<16x8xf32>, vector<8x64xf32>, vector<16x64xf32> -> vector<16x64xf32>
    %55 = arith.addf %50, %54 : vector<16x64xf32>
    %56 = vector.extract_strided_slice %44 {offsets = [0, 8], sizes = [8, 64], strides = [1, 1]} : vector<8x92xf32> to vector<8x64xf32>
    %c2_32 = arith.constant 2 : index
    %c0_33 = arith.constant 0 : index
    %c0_34 = arith.constant 0 : index
    %57 = vector.load %arg6[%c2_32, %c0_33, %c0_34] : memref<8x16x8xf32, #tpu.memory_space<vmem>>, vector<1x16x8xf32>
    %58 = vector.shape_cast %57 : vector<1x16x8xf32> to vector<16x8xf32>
    %cst_35 = arith.constant dense<0.000000e+00> : vector<16x64xf32>
    %59 = tpu.matmul %58, %56, %cst_35 {dimension_numbers = #tpu.dot_dimension_numbers<[1], [0], [0], [1], [0, 0, 1, 1], [], []>} : vector<16x8xf32>, vector<8x64xf32>, vector<16x64xf32> -> vector<16x64xf32>
    %60 = arith.addf %55, %59 : vector<16x64xf32>
    %61 = vector.extract_strided_slice %44 {offsets = [0, 12], sizes = [8, 64], strides = [1, 1]} : vector<8x92xf32> to vector<8x64xf32>
    %c3_36 = arith.constant 3 : index
    %c0_37 = arith.constant 0 : index
    %c0_38 = arith.constant 0 : index
    %62 = vector.load %arg6[%c3_36, %c0_37, %c0_38] : memref<8x16x8xf32, #tpu.memory_space<vmem>>, vector<1x16x8xf32>
    %63 = vector.shape_cast %62 : vector<1x16x8xf32> to vector<16x8xf32>
    %cst_39 = arith.constant dense<0.000000e+00> : vector<16x64xf32>
    %64 = tpu.matmul %63, %61, %cst_39 {dimension_numbers = #tpu.dot_dimension_numbers<[1], [0], [0], [1], [0, 0, 1, 1], [], []>} : vector<16x8xf32>, vector<8x64xf32>, vector<16x64xf32> -> vector<16x64xf32>
    %65 = arith.addf %60, %64 : vector<16x64xf32>
    %66 = vector.extract_strided_slice %44 {offsets = [0, 16], sizes = [8, 64], strides = [1, 1]} : vector<8x92xf32> to vector<8x64xf32>
    %c4 = arith.constant 4 : index
    %c0_40 = arith.constant 0 : index
    %c0_41 = arith.constant 0 : index
    %67 = vector.load %arg6[%c4, %c0_40, %c0_41] : memref<8x16x8xf32, #tpu.memory_space<vmem>>, vector<1x16x8xf32>
    %68 = vector.shape_cast %67 : vector<1x16x8xf32> to vector<16x8xf32>
    %cst_42 = arith.constant dense<0.000000e+00> : vector<16x64xf32>
    %69 = tpu.matmul %68, %66, %cst_42 {dimension_numbers = #tpu.dot_dimension_numbers<[1], [0], [0], [1], [0, 0, 1, 1], [], []>} : vector<16x8xf32>, vector<8x64xf32>, vector<16x64xf32> -> vector<16x64xf32>
    %70 = arith.addf %65, %69 : vector<16x64xf32>
    %71 = vector.extract_strided_slice %44 {offsets = [0, 20], sizes = [8, 64], strides = [1, 1]} : vector<8x92xf32> to vector<8x64xf32>
    %c5 = arith.constant 5 : index
    %c0_43 = arith.constant 0 : index
    %c0_44 = arith.constant 0 : index
    %72 = vector.load %arg6[%c5, %c0_43, %c0_44] : memref<8x16x8xf32, #tpu.memory_space<vmem>>, vector<1x16x8xf32>
    %73 = vector.shape_cast %72 : vector<1x16x8xf32> to vector<16x8xf32>
    %cst_45 = arith.constant dense<0.000000e+00> : vector<16x64xf32>
    %74 = tpu.matmul %73, %71, %cst_45 {dimension_numbers = #tpu.dot_dimension_numbers<[1], [0], [0], [1], [0, 0, 1, 1], [], []>} : vector<16x8xf32>, vector<8x64xf32>, vector<16x64xf32> -> vector<16x64xf32>
    %75 = arith.addf %70, %74 : vector<16x64xf32>
    %76 = vector.extract_strided_slice %44 {offsets = [0, 24], sizes = [8, 64], strides = [1, 1]} : vector<8x92xf32> to vector<8x64xf32>
    %c6 = arith.constant 6 : index
    %c0_46 = arith.constant 0 : index
    %c0_47 = arith.constant 0 : index
    %77 = vector.load %arg6[%c6, %c0_46, %c0_47] : memref<8x16x8xf32, #tpu.memory_space<vmem>>, vector<1x16x8xf32>
    %78 = vector.shape_cast %77 : vector<1x16x8xf32> to vector<16x8xf32>
    %cst_48 = arith.constant dense<0.000000e+00> : vector<16x64xf32>
    %79 = tpu.matmul %78, %76, %cst_48 {dimension_numbers = #tpu.dot_dimension_numbers<[1], [0], [0], [1], [0, 0, 1, 1], [], []>} : vector<16x8xf32>, vector<8x64xf32>, vector<16x64xf32> -> vector<16x64xf32>
    %80 = arith.addf %75, %79 : vector<16x64xf32>
    %81 = vector.extract_strided_slice %44 {offsets = [0, 28], sizes = [8, 64], strides = [1, 1]} : vector<8x92xf32> to vector<8x64xf32>
    %c7 = arith.constant 7 : index
    %c0_49 = arith.constant 0 : index
    %c0_50 = arith.constant 0 : index
    %82 = vector.load %arg6[%c7, %c0_49, %c0_50] : memref<8x16x8xf32, #tpu.memory_space<vmem>>, vector<1x16x8xf32>
    %83 = vector.shape_cast %82 : vector<1x16x8xf32> to vector<16x8xf32>
    %cst_51 = arith.constant dense<0.000000e+00> : vector<16x64xf32>
    %84 = tpu.matmul %83, %81, %cst_51 {dimension_numbers = #tpu.dot_dimension_numbers<[1], [0], [0], [1], [0, 0, 1, 1], [], []>} : vector<16x8xf32>, vector<8x64xf32>, vector<16x64xf32> -> vector<16x64xf32>
    %85 = arith.addf %80, %84 : vector<16x64xf32>
    %c0_52 = arith.constant 0 : index
    %c0_53 = arith.constant 0 : index
    %86 = vector.load %arg7[%c0_52, %c0_53] : memref<16x1xf32, #tpu.memory_space<vmem>>, vector<16x1xf32>
    %87 = vector.broadcast %86 : vector<16x1xf32> to vector<16x64xf32>
    %88 = arith.addf %85, %87 : vector<16x64xf32>
    %cst_54 = arith.constant 0.000000e+00 : f32
    %89 = vector.broadcast %cst_54 : f32 to vector<16x64xf32>
    %90 = arith.maximumf %88, %89 : vector<16x64xf32>
    %c0_55 = arith.constant 0 : index
    %c0_56 = arith.constant 0 : index
    %c0_57 = arith.constant 0 : index
    %91 = vector.load %arg8[%c0_55, %c0_56, %c0_57] : memref<1x16x64xf32, #tpu.memory_space<vmem>>, vector<1x16x64xf32>
    %92 = vector.shape_cast %91 : vector<1x16x64xf32> to vector<16x64xf32>
    %93 = vector.shape_cast %90 : vector<16x64xf32> to vector<1x16x64xf32>
    tpu.vector_store %arg8[%c0_55, %c0_56, %c0_57], %93 {strides = array<i32>} : memref<1x16x64xf32, #tpu.memory_space<vmem>>, vector<1x16x64xf32>,
    return
  }
  func.func @transform_0(%arg0: i32) -> (i32, i32, i32) {
    %c0_i32 = arith.constant 0 : i32
    %c0_i32_0 = arith.constant 0 : i32
    %c0_i32_1 = arith.constant 0 : i32
    return %arg0, %c0_i32, %c0_i32_0 : i32, i32, i32
  }
  func.func @transform_1(%arg0: i32) -> (i32, i32) {
    %c0_i32 = arith.constant 0 : i32
    %c0_i32_0 = arith.constant 0 : i32
    %c0_i32_1 = arith.constant 0 : i32
    return %c0_i32, %c0_i32_0 : i32, i32
  }
  func.func @transform_2(%arg0: i32) -> (i32, i32) {
    %c0_i32 = arith.constant 0 : i32
    %c0_i32_0 = arith.constant 0 : i32
    %c0_i32_1 = arith.constant 0 : i32
    return %c0_i32, %c0_i32_0 : i32, i32
  }
  func.func @transform_3(%arg0: i32) -> (i32, i32, i32) {
    %c0_i32 = arith.constant 0 : i32
    %c0_i32_0 = arith.constant 0 : i32
    %c0_i32_1 = arith.constant 0 : i32
    %c0_i32_2 = arith.constant 0 : i32
    return %c0_i32, %c0_i32_0, %c0_i32_1 : i32, i32, i32
  }
  func.func @transform_4(%arg0: i32) -> (i32, i32) {
    %c0_i32 = arith.constant 0 : i32
    %c0_i32_0 = arith.constant 0 : i32
    %c0_i32_1 = arith.constant 0 : i32
    return %c0_i32, %c0_i32_0 : i32, i32
  }
  func.func @transform_5(%arg0: i32) -> (i32, i32, i32) {
    %c0_i32 = arith.constant 0 : i32
    %c0_i32_0 = arith.constant 0 : i32
    %c0_i32_1 = arith.constant 0 : i32
    %c0_i32_2 = arith.constant 0 : i32
    return %c0_i32, %c0_i32_0, %c0_i32_1 : i32, i32, i32
  }
  func.func @transform_6(%arg0: i32) -> (i32, i32) {
    %c0_i32 = arith.constant 0 : i32
    %c0_i32_0 = arith.constant 0 : i32
    %c0_i32_1 = arith.constant 0 : i32
    return %c0_i32, %c0_i32_0 : i32, i32
  }
  func.func @transform_7(%arg0: i32) -> (i32, i32, i32) {
    %c0_i32 = arith.constant 0 : i32
    %c0_i32_0 = arith.constant 0 : i32
    %c0_i32_1 = arith.constant 0 : i32
    return %arg0, %c0_i32, %c0_i32_0 : i32, i32, i32
  }
}

</mosaic_0001>

<llo_original>
// kernel: tpu_custom_call.1
$region0: #{tpu_custom_call.1}
  #allocation0 [shape = 'u32[]', space=smem, size = 0x4, offset = 0x4, fixed_abs, tag = 'smem constant byte address 0x4 - core index']
  #allocation1 [shape = 'u32[144,128]{1,0:T(1,128)}', space=vmem, size = 0x12000, scoped, tag = 'internal scratch']
  %s0 = inlined_call_operand.vmem [shape: f32[2,1,99], index: 0, kind: input, shape index: {}]
  %s1 = inlined_call_operand.vmem [shape: f32[4,2], index: 1, kind: input, shape index: {}]
  %s2 = inlined_call_operand.vmem [shape: f32[4,1], index: 2, kind: input, shape index: {}]
  %s3 = inlined_call_operand.vmem [shape: f32[4,8,4], index: 3, kind: input, shape index: {}]
  %s4 = inlined_call_operand.vmem [shape: f32[8,1], index: 4, kind: input, shape index: {}]
  %s5 = inlined_call_operand.vmem [shape: f32[8,16,8], index: 5, kind: input, shape index: {}]
  %s6 = inlined_call_operand.vmem [shape: f32[16,1], index: 6, kind: input, shape index: {}]
  %s7 = inlined_call_operand.hbm [shape: f32[2,16,64], index: 7, kind: output, shape index: {}]
  %s8 = sld [smem:[#allocation0]]
  $region61: #{tpu_custom_call.1} parent=0
    _
  %s10 = ssub.s32 1, %s8
  %s11 = scalar_select 0, %s10, %s8
  $region1: #{tpu_custom_call.1} parent=0
    #allocation2 [shape = 'u8[16384]{0}', space=vmem, size = 0x4000, scoped, tag = 'output window, operand 0']
    #allocation3 [shape = 's32[2]{0}', space=sflag, size = 0x8, scoped, tag = 'scoped memory for tpu_custom_call.1']
    %12 = vsyncpa [#allocation3], 0
    %s13 = scalar_lea.sflag [#allocation3], 1
    %14 = vsyncpa %s13, 0
    loop: start=0, step=1, limit=4
    $region2: #{tpu_custom_call.1} parent=1 // loop_pre_header
      _
    $region3: #{tpu_custom_call.1} parent=1 // loop_header
      %s16 = sphi 0, %s20
      %p17 = scmp.ge.s32.totalorder %s16, 4
      %s26 = sphi 0, %s28
      %s29 = sphi 0, %s26
      %s30 = sphi 0, %s29
      %s46 = sphi 0, %s30
      %s50 = sphi 0, %s50
      %s52 = sphi 0, %s50
      %s53 = sphi 0, %s52
      %s67 = sphi 0, %s53
      %s71 = sphi 0, %s71
      %s73 = sphi 0, %s71
      %s74 = sphi 0, %s73
      %s88 = sphi 0, %s74
      %s92 = sphi 0, %s92
      %s94 = sphi 0, %s92
      %s95 = sphi 0, %s94
      %s109 = sphi 0, %s95
      %s113 = sphi 0, %s113
      %s115 = sphi 0, %s113
      %s116 = sphi 0, %s115
      %s130 = sphi 0, %s116
      %s134 = sphi 0, %s134
      %s136 = sphi 0, %s134
      %s137 = sphi 0, %s136
      %s151 = sphi 0, %s137
      %s155 = sphi 0, %s155
      %s157 = sphi 0, %s155
      %s158 = sphi 0, %s157
      %s172 = sphi 0, %s158
      %s178 = sphi 0, %s180
      %s181 = sphi 0, %s178
      %s182 = sphi 0, %s181
      %s198 = sphi 0, %s182
    $region4: #{tpu_custom_call.1} parent=1 // loop_header_branch
      %19 = sbr.rel (%p17) target = $region8
    $region5: #{tpu_custom_call.1} parent=1 // loop_body
      %s21 = ssub.s32 %s16, 1
      %s22 = ssub.s32 %s16, 2
      %s23 = sadd.s32 %s16, 1
      %s24 = ssub.s32 %s16, %s23
      %p25 = scmp.eq.s32.totalorder %s24, 0
      %s27 = sadd.s32 %s26, 1
      %s28 = scalar_select %p25, %s26, %s27
      %p31 = pneg %p25
      %p32 = scmp.eq.s32.totalorder %s16, 1
      %p33 = por %p31, %p32
      %p34 = scmp.ne.s32.totalorder %s26, %s29
      %p35 = scmp.eq.s32.totalorder %s16, 0
      %p36 = por %p34, %p35
      %p37 = scmp.ne.s32.totalorder %s26, %s29
      %p38 = scmp.eq.s32.totalorder %s21, 1
      %p39 = por %p37, %p38
      %p40 = scmp.ne.s32.totalorder %s29, %s30
      %p41 = scmp.eq.s32.totalorder %s21, 0
      %p42 = por %p40, %p41
      %p43 = scmp.ne.s32.totalorder %s29, %s30
      %p44 = scmp.eq.s32.totalorder %s22, 1
      %p45 = por %p43, %p44
      %p47 = scmp.ne.s32.totalorder %s30, %s46
      %p48 = scmp.eq.s32.totalorder %s22, 0
      %p49 = por %p47, %p48
      %s51 = sadd.s32 %s50, 1
      %p54 = scmp.eq.s32.totalorder %s16, 1
      %p55 = scmp.ne.s32.totalorder %s50, %s52
      %p56 = scmp.eq.s32.totalorder %s16, 0
      %p57 = por %p55, %p56
      %p58 = scmp.ne.s32.totalorder %s50, %s52
      %p59 = scmp.eq.s32.totalorder %s21, 1
      %p60 = por %p58, %p59
      %p61 = scmp.ne.s32.totalorder %s52, %s53
      %p62 = scmp.eq.s32.totalorder %s21, 0
      %p63 = por %p61, %p62
      %p64 = scmp.ne.s32.totalorder %s52, %s53
      %p65 = scmp.eq.s32.totalorder %s22, 1
      %p66 = por %p64, %p65
      %p68 = scmp.ne.s32.totalorder %s53, %s67
      %p69 = scmp.eq.s32.totalorder %s22, 0
      %p70 = por %p68, %p69
      %s72 = sadd.s32 %s71, 1
      %p75 = scmp.eq.s32.totalorder %s16, 1
      %p76 = scmp.ne.s32.totalorder %s71, %s73
      %p77 = scmp.eq.s32.totalorder %s16, 0
      %p78 = por %p76, %p77
      %p79 = scmp.ne.s32.totalorder %s71, %s73
      %p80 = scmp.eq.s32.totalorder %s21, 1
      %p81 = por %p79, %p80
      %p82 = scmp.ne.s32.totalorder %s73, %s74
      %p83 = scmp.eq.s32.totalorder %s21, 0
      %p84 = por %p82, %p83
      %p85 = scmp.ne.s32.totalorder %s73, %s74
      %p86 = scmp.eq.s32.totalorder %s22, 1
      %p87 = por %p85, %p86
      %p89 = scmp.ne.s32.totalorder %s74, %s88
      %p90 = scmp.eq.s32.totalorder %s22, 0
      %p91 = por %p89, %p90
      %s93 = sadd.s32 %s92, 1
      %p96 = scmp.eq.s32.totalorder %s16, 1
      %p97 = scmp.ne.s32.totalorder %s92, %s94
      %p98 = scmp.eq.s32.totalorder %s16, 0
      %p99 = por %p97, %p98
      %p100 = scmp.ne.s32.totalorder %s92, %s94
      %p101 = scmp.eq.s32.totalorder %s21, 1
      %p102 = por %p100, %p101
      %p103 = scmp.ne.s32.totalorder %s94, %s95
      %p104 = scmp.eq.s32.totalorder %s21, 0
      %p105 = por %p103, %p104
      %p106 = scmp.ne.s32.totalorder %s94, %s95
      %p107 = scmp.eq.s32.totalorder %s22, 1
      %p108 = por %p106, %p107
      %p110 = scmp.ne.s32.totalorder %s95, %s109
      %p111 = scmp.eq.s32.totalorder %s22, 0
      %p112 = por %p110, %p111
      %s114 = sadd.s32 %s113, 1
      %p117 = scmp.eq.s32.totalorder %s16, 1
      %p118 = scmp.ne.s32.totalorder %s113, %s115
      %p119 = scmp.eq.s32.totalorder %s16, 0
      %p120 = por %p118, %p119
      %p121 = scmp.ne.s32.totalorder %s113, %s115
      %p122 = scmp.eq.s32.totalorder %s21, 1
      %p123 = por %p121, %p122
      %p124 = scmp.ne.s32.totalorder %s115, %s116
      %p125 = scmp.eq.s32.totalorder %s21, 0
      %p126 = por %p124, %p125
      %p127 = scmp.ne.s32.totalorder %s115, %s116
      %p128 = scmp.eq.s32.totalorder %s22, 1
      %p129 = por %p127, %p128
      %p131 = scmp.ne.s32.totalorder %s116, %s130
      %p132 = scmp.eq.s32.totalorder %s22, 0
      %p133 = por %p131, %p132
      %s135 = sadd.s32 %s134, 1
      %p138 = scmp.eq.s32.totalorder %s16, 1
      %p139 = scmp.ne.s32.totalorder %s134, %s136
      %p140 = scmp.eq.s32.totalorder %s16, 0
      %p141 = por %p139, %p140
      %p142 = scmp.ne.s32.totalorder %s134, %s136
      %p143 = scmp.eq.s32.totalorder %s21, 1
      %p144 = por %p142, %p143
      %p145 = scmp.ne.s32.totalorder %s136, %s137
      %p146 = scmp.eq.s32.totalorder %s21, 0
      %p147 = por %p145, %p146
      %p148 = scmp.ne.s32.totalorder %s136, %s137
      %p149 = scmp.eq.s32.totalorder %s22, 1
      %p150 = por %p148, %p149
      %p152 = scmp.ne.s32.totalorder %s137, %s151
      %p153 = scmp.eq.s32.totalorder %s22, 0
      %p154 = por %p152, %p153
      %s156 = sadd.s32 %s155, 1
      %p159 = scmp.eq.s32.totalorder %s16, 1
      %p160 = scmp.ne.s32.totalorder %s155, %s157
      %p161 = scmp.eq.s32.totalorder %s16, 0
      %p162 = por %p160, %p161
      %p163 = scmp.ne.s32.totalorder %s155, %s157
      %p164 = scmp.eq.s32.totalorder %s21, 1
      %p165 = por %p163, %p164
      %p166 = scmp.ne.s32.totalorder %s157, %s158
      %p167 = scmp.eq.s32.totalorder %s21, 0
      %p168 = por %p166, %p167
      %p169 = scmp.ne.s32.totalorder %s157, %s158
      %p170 = scmp.eq.s32.totalorder %s22, 1
      %p171 = por %p169, %p170
      %p173 = scmp.ne.s32.totalorder %s158, %s172
      %p174 = scmp.eq.s32.totalorder %s22, 0
      %p175 = por %p173, %p174
      %s176 = ssub.s32 %s16, %s23
      %p177 = scmp.eq.s32.totalorder %s176, 0
      %s179 = sadd.s32 %s178, 1
      %s180 = scalar_select %p177, %s178, %s179
      %p183 = pneg %p177
      %p184 = scmp.eq.s32.totalorder %s16, 1
      %p185 = por %p183, %p184
      %p186 = scmp.ne.s32.totalorder %s178, %s181
      %p187 = scmp.eq.s32.totalorder %s16, 0
      %p188 = por %p186, %p187
      %p189 = scmp.ne.s32.totalorder %s178, %s181
      %p190 = scmp.eq.s32.totalorder %s21, 1
      %p191 = por %p189, %p190
      %p192 = scmp.ne.s32.totalorder %s181, %s182
      %p193 = scmp.eq.s32.totalorder %s21, 0
      %p194 = por %p192, %p193
      %p195 = scmp.ne.s32.totalorder %s181, %s182
      %p196 = scmp.eq.s32.totalorder %s22, 1
      %p197 = por %p195, %p196
      %p199 = scmp.ne.s32.totalorder %s182, %s198
      %p200 = scmp.eq.s32.totalorder %s22, 0
      %p201 = por %p199, %p200
      %p202 = scmp.le.s32.totalorder 1, %s16
      %p203 = scmp.lt.s32.totalorder %s16, 3
      %p204 = pnand %p202, %p203
      %p205 = pneg %p204
      // Predicated region
      $region9: #{tpu_custom_call.1} parent=5 // pred_check
        _
      $region10: #{tpu_custom_call.1} parent=5 // pred_check_branch
        %207 = sbr.rel (%p204) target = $region12
      $region11: #{tpu_custom_call.1} parent=5 // pred_region
        %s208 = ssub.s32 %s16, 1
        // Predicated region
        $region13: #{tpu_custom_call.1} parent=11 // pred_check
          %p209 = pneg %p63
        $region14: #{tpu_custom_call.1} parent=11 // pred_check_branch
          %211 = sbr.rel (%p209) target = $region16
        $region15: #{tpu_custom_call.1} parent=11 // pred_region
          _
        $region16: #{tpu_custom_call.1} parent=11 // pred_fallthru
          _
        // Predicated region
        $region17: #{tpu_custom_call.1} parent=11 // pred_check
          %p212 = pneg %p84
        $region18: #{tpu_custom_call.1} parent=11 // pred_check_branch
          %214 = sbr.rel (%p212) target = $region20
        $region19: #{tpu_custom_call.1} parent=11 // pred_region
          _
        $region20: #{tpu_custom_call.1} parent=11 // pred_fallthru
          _
        // Predicated region
        $region21: #{tpu_custom_call.1} parent=11 // pred_check
          %p215 = pneg %p105
        $region22: #{tpu_custom_call.1} parent=11 // pred_check_branch
          %217 = sbr.rel (%p215) target = $region24
        $region23: #{tpu_custom_call.1} parent=11 // pred_region
          _
        $region24: #{tpu_custom_call.1} parent=11 // pred_fallthru
          _
        // Predicated region
        $region25: #{tpu_custom_call.1} parent=11 // pred_check
          %p218 = pneg %p126
        $region26: #{tpu_custom_call.1} parent=11 // pred_check_branch
          %220 = sbr.rel (%p218) target = $region28
        $region27: #{tpu_custom_call.1} parent=11 // pred_region
          _
        $region28: #{tpu_custom_call.1} parent=11 // pred_fallthru
          _
        // Predicated region
        $region29: #{tpu_custom_call.1} parent=11 // pred_check
          %p221 = pneg %p147
        $region30: #{tpu_custom_call.1} parent=11 // pred_check_branch
          %223 = sbr.rel (%p221) target = $region32
        $region31: #{tpu_custom_call.1} parent=11 // pred_region
          _
        $region32: #{tpu_custom_call.1} parent=11 // pred_fallthru
          _
        // Predicated region
        $region33: #{tpu_custom_call.1} parent=11 // pred_check
          %p224 = pneg %p168
        $region34: #{tpu_custom_call.1} parent=11 // pred_check_branch
          %226 = sbr.rel (%p224) target = $region36
        $region35: #{tpu_custom_call.1} parent=11 // pred_region
          _
        $region36: #{tpu_custom_call.1} parent=11 // pred_fallthru
          _
      $region12: #{tpu_custom_call.1} parent=5 // pred_fallthru
        _
      %p227 = scmp.lt.s32.totalorder %s16, 2
      // Predicated region
      $region37: #{tpu_custom_call.1} parent=5 // pred_check
        %p228 = pneg %p227
      $region38: #{tpu_custom_call.1} parent=5 // pred_check_branch
        %230 = sbr.rel (%p228) target = $region40
      $region39: #{tpu_custom_call.1} parent=5 // pred_region
        // Predicated region
        $region41: #{tpu_custom_call.1} parent=39 // pred_check
          %p231 = pneg %p36
        $region42: #{tpu_custom_call.1} parent=39 // pred_check_branch
          %233 = sbr.rel (%p231) target = $region44
        $region43: #{tpu_custom_call.1} parent=39 // pred_region
          %p234 = scmp.lt.s32.totalorder %s16, 1
          %s235 = scalar_select %p234, %s16, 1
          %s236 = scalar_lea.vmem %s0, %s235
        $region44: #{tpu_custom_call.1} parent=39 // pred_fallthru
          _
      $region40: #{tpu_custom_call.1} parent=5 // pred_fallthru
        _
      %p237 = scmp.le.s32.totalorder 1, %s16
      %p238 = scmp.lt.s32.totalorder %s16, 3
      %p239 = pnand %p237, %p238
      %p240 = pneg %p239
      // Predicated region
      $region45: #{tpu_custom_call.1} parent=5 // pred_check
        _
      $region46: #{tpu_custom_call.1} parent=5 // pred_check_branch
        %242 = sbr.rel (%p239) target = $region48
      $region47: #{tpu_custom_call.1} parent=5 // pred_region
        %s243 = ssub.s32 %s16, 1
        %p244 = scmp.lt.s32.totalorder %s21, 1
        %s245 = scalar_select %p244, %s21, 1
        %s246 = scalar_lea.vmem %s0, %s245
        %p247 = pneg %p42
        %p248 = pneg %p39
        %p249 = pneg %p63
        %p250 = pneg %p60
        %p251 = pneg %p84
        %p252 = pneg %p81
        %p253 = pneg %p105
        %p254 = pneg %p102
        %p255 = pneg %p126
        %p256 = pneg %p123
        %p257 = pneg %p147
        %p258 = pneg %p144
        %p259 = pneg %p168
        %p260 = pneg %p165
        %p261 = pneg %p194
        %p262 = pneg %p191
        %s263 = sand.u32 %s181, 1
        %s264 = scalar_lea.sflag [#allocation3], %s263
        %s265 = sand.u32 %s181, 1
        %s266 = smul.addr %s265, 16
        %s267 = scalar_lea.vmem [#allocation2], %s266
        %p268 = scmp.lt.s32.totalorder %s21, 1
        %s269 = scalar_select %p268, %s21, 1
        %s270 = scalar_lea.vmem %s0, %s269
        %v271 = vld [vmem:[%s270] sm:$0x1]
        %v272 = vld [vmem:[%s1] sm:$0xf]
        %274 = vset.pattern.permute.xlu0 0
        %275 = vperm.xlu0 %274, %v272
        %v276 = vpop.permute.xlu0 %275
        %v279 = vlaneseq
        %v280 = vshrl.u32 %v279, 7
        %v281 = vsub.s32 0, %v280
        %v282 = vrot.slane %v271, %v281
        %v284 = vmul.f32 %v276, %v282
        %285 = vset.pattern.permute.xlu0 1
        %286 = vperm.xlu0 %285, %v272
        %v287 = vpop.permute.xlu0 %286
        %v289 = vmul.f32 %v287, %v282
        %291 = vrot.lane.b32.xlu0 %v289, 127
        %v292 = vpop.permute.xlu0 %291
        %v294 = vadd.f32 %v284, %v292
        %v295 = vld [vmem:[%s2] sm:$0xf]
        %297 = vset.pattern.permute.xlu0 0
        %298 = vperm.xlu0 %297, %v295
        %v299 = vpop.permute.xlu0 %298
        %v301 = vadd.f32 %v294, %v299
        %v302 = vmax.f32 %v301, 0.0
        %v303 = vld [vmem:[%s3] sm:$0xff]
        %s304 = scalar_lea.vmem %s3, 8
        %v305 = vld [vmem:[%s304] sm:$0xff]
        %307 = vrot.lane.b32.xlu0 %v302, 126
        %v308 = vpop.permute.xlu0 %307
        %vm309 = vcmask 31744
        %v311 = vsel %vm309, %v305, 0
        %vm313 = vcmask 1043456
        %v314 = vsel %vm313, %v308, 0
        %316 = vmatprep.subr.mxu0 0.0
        %317 = vmatpush1.msra.mxu0 0.0
        %318 = vmatprep.subr.mxu0 0.0
        %319 = vmatpush1.msra.mxu0 0.0
        %320 = vmatprep.subr.mxu0 0.0
        %321 = vmatpush1.msra.mxu0 0.0
        %322 = vmatprep.subr.mxu0 0.0
        %323 = vmatpush1.msra.mxu0 0.0
        %324 = vmatprep.subr.mxu0 0.0
        %325 = vmatpush1.msra.mxu0 0.0
        %326 = vmatprep.subr.mxu0 0.0
        %327 = vmatpush1.msra.mxu0 0.0
        %328 = vmatprep.subr.mxu0 0.0
        %329 = vmatpush1.msra.mxu0 0.0
        %330 = vmatprep.subr.mxu0 0.0
        %331 = vmatpush1.msra.mxu0 0.0
        %332 = vmatprep.subr.mxu0 0.0
        %333 = vmatpush1.msra.mxu0 0.0
        %334 = vmatprep.subr.mxu0 0.0
        %335 = vmatpush1.msra.mxu0 0.0
        %336 = vmatprep.subr.mxu0 0.0
        %337 = vmatpush1.msra.mxu0 0.0
        %338 = vmatprep.subr.mxu0 0.0
        %339 = vmatpush1.msra.mxu0 0.0
        %340 = vmatprep.subr.mxu0 0.0
        %341 = vmatpush1.msra.mxu0 0.0
        %342 = vmatprep.subr.mxu0 0.0
        %343 = vmatpush1.msra.mxu0 0.0
        %344 = vmatprep.subr.mxu0 0.0
        %345 = vmatpush1.msra.mxu0 0.0
        %346 = vmatprep.subr.mxu0 0.0
        %347 = vmatpush1.msra.mxu0 %v314
        %348 = vmatprep.subr.mxu0 0.0
        %349 = vmatpush2.msra.mxu0 0.0
        %350 = vmatprep.subr.mxu0 0.0
        %351 = vmatpush2.msra.mxu0 0.0
        %352 = vmatprep.subr.mxu0 0.0
        %353 = vmatpush2.msra.mxu0 0.0
        %354 = vmatprep.subr.mxu0 0.0
        %355 = vmatpush2.msra.mxu0 0.0
        %356 = vmatprep.subr.mxu0 0.0
        %357 = vmatpush2.msra.mxu0 0.0
        %358 = vmatprep.subr.mxu0 0.0
        %359 = vmatpush2.msra.mxu0 0.0
        %360 = vmatprep.subr.mxu0 0.0
        %361 = vmatpush2.msra.mxu0 0.0
        %362 = vmatprep.subr.mxu0 0.0
        %363 = vmatpush2.msra.mxu0 0.0
        %364 = vmatprep.subr.mxu0 0.0
        %365 = vmatpush2.msra.mxu0 0.0
        %366 = vmatprep.subr.mxu0 0.0
        %367 = vmatpush2.msra.mxu0 0.0
        %368 = vmatprep.subr.mxu0 0.0
        %369 = vmatpush2.msra.mxu0 0.0
        %370 = vmatprep.subr.mxu0 0.0
        %371 = vmatpush2.msra.mxu0 0.0
        %372 = vmatprep.subr.mxu0 0.0
        %373 = vmatpush2.msra.mxu0 0.0
        %374 = vmatprep.subr.mxu0 0.0
        %375 = vmatpush2.msra.mxu0 0.0
        %376 = vmatprep.subr.mxu0 0.0
        %377 = vmatpush2.msra.mxu0 0.0
        %378 = vmatprep.subr.mxu0 0.0
        %379 = vmatpush2.msra.mxu0 0.0
        %380 = vmatprep.mubr.f32.mxu0 0.0
        %381 = vmatmul.mubr.f32.gmra.mxu0 %v311
        %v382 = vpop.f32.mrf.mxu0
        %v383 = vadd.f32 0.0, %v382
        %v384 = vpop.f32.mrf.mxu0
        %385 = vdwg.mxu0
        %v387 = vsel %vm309, %v303, 0
        %v389 = vsel %vm313, %v302, 0
        %391 = vmatprep.subr.mxu0 0.0
        %392 = vmatpush1.msra.mxu0 0.0
        %393 = vmatprep.subr.mxu0 0.0
        %394 = vmatpush1.msra.mxu0 0.0
        %395 = vmatprep.subr.mxu0 0.0
        %396 = vmatpush1.msra.mxu0 0.0
        %397 = vmatprep.subr.mxu0 0.0
        %398 = vmatpush1.msra.mxu0 0.0
        %399 = vmatprep.subr.mxu0 0.0
        %400 = vmatpush1.msra.mxu0 0.0
        %401 = vmatprep.subr.mxu0 0.0
        %402 = vmatpush1.msra.mxu0 0.0
        %403 = vmatprep.subr.mxu0 0.0
        %404 = vmatpush1.msra.mxu0 0.0
        %405 = vmatprep.subr.mxu0 0.0
        %406 = vmatpush1.msra.mxu0 0.0
        %407 = vmatprep.subr.mxu0 0.0
        %408 = vmatpush1.msra.mxu0 0.0
        %409 = vmatprep.subr.mxu0 0.0
        %410 = vmatpush1.msra.mxu0 0.0
        %411 = vmatprep.subr.mxu0 0.0
        %412 = vmatpush1.msra.mxu0 0.0
        %413 = vmatprep.subr.mxu0 0.0
        %414 = vmatpush1.msra.mxu0 0.0
        %415 = vmatprep.subr.mxu0 0.0
        %416 = vmatpush1.msra.mxu0 0.0
        %417 = vmatprep.subr.mxu0 0.0
        %418 = vmatpush1.msra.mxu0 0.0
        %419 = vmatprep.subr.mxu0 0.0
        %420 = vmatpush1.msra.mxu0 0.0
        %421 = vmatprep.subr.mxu0 0.0
        %422 = vmatpush1.msra.mxu0 %v389
        %423 = vmatprep.subr.mxu0 0.0
        %424 = vmatpush2.msra.mxu0 0.0
        %425 = vmatprep.subr.mxu0 0.0
        %426 = vmatpush2.msra.mxu0 0.0
        %427 = vmatprep.subr.mxu0 0.0
        %428 = vmatpush2.msra.mxu0 0.0
        %429 = vmatprep.subr.mxu0 0.0
        %430 = vmatpush2.msra.mxu0 0.0
        %431 = vmatprep.subr.mxu0 0.0
        %432 = vmatpush2.msra.mxu0 0.0
        %433 = vmatprep.subr.mxu0 0.0
        %434 = vmatpush2.msra.mxu0 0.0
        %435 = vmatprep.subr.mxu0 0.0
        %436 = vmatpush2.msra.mxu0 0.0
        %437 = vmatprep.subr.mxu0 0.0
        %438 = vmatpush2.msra.mxu0 0.0
        %439 = vmatprep.subr.mxu0 0.0
        %440 = vmatpush2.msra.mxu0 0.0
        %441 = vmatprep.subr.mxu0 0.0
        %442 = vmatpush2.msra.mxu0 0.0
        %443 = vmatprep.subr.mxu0 0.0
        %444 = vmatpush2.msra.mxu0 0.0
        %445 = vmatprep.subr.mxu0 0.0
        %446 = vmatpush2.msra.mxu0 0.0
        %447 = vmatprep.subr.mxu0 0.0
        %448 = vmatpush2.msra.mxu0 0.0
        %449 = vmatprep.subr.mxu0 0.0
        %450 = vmatpush2.msra.mxu0 0.0
        %451 = vmatprep.subr.mxu0 0.0
        %452 = vmatpush2.msra.mxu0 0.0
        %453 = vmatprep.subr.mxu0 0.0
        %454 = vmatpush2.msra.mxu0 0.0
        %455 = vmatprep.mubr.f32.mxu0 0.0
        %456 = vmatmul.mubr.f32.gmra.mxu0 %v387
        %v457 = vpop.f32.mrf.mxu0
        %v458 = vadd.f32 %v383, %v457
        %v459 = vpop.f32.mrf.mxu0
        %460 = vdwg.mxu0
        %s461 = scalar_lea.vmem %s3, 16
        %v462 = vld [vmem:[%s461] sm:$0xff]
        %463 = vrot.lane.b32.xlu0 %v302, 124
        %v464 = vpop.permute.xlu0 %463
        %v466 = vsel %vm309, %v462, 0
        %v468 = vsel %vm313, %v464, 0
        %470 = vmatprep.subr.mxu0 0.0
        %471 = vmatpush1.msra.mxu0 0.0
        %472 = vmatprep.subr.mxu0 0.0
        %473 = vmatpush1.msra.mxu0 0.0
        %474 = vmatprep.subr.mxu0 0.0
        %475 = vmatpush1.msra.mxu0 0.0
        %476 = vmatprep.subr.mxu0 0.0
        %477 = vmatpush1.msra.mxu0 0.0
        %478 = vmatprep.subr.mxu0 0.0
        %479 = vmatpush1.msra.mxu0 0.0
        %480 = vmatprep.subr.mxu0 0.0
        %481 = vmatpush1.msra.mxu0 0.0
        %482 = vmatprep.subr.mxu0 0.0
        %483 = vmatpush1.msra.mxu0 0.0
        %484 = vmatprep.subr.mxu0 0.0
        %485 = vmatpush1.msra.mxu0 0.0
        %486 = vmatprep.subr.mxu0 0.0
        %487 = vmatpush1.msra.mxu0 0.0
        %488 = vmatprep.subr.mxu0 0.0
        %489 = vmatpush1.msra.mxu0 0.0
        %490 = vmatprep.subr.mxu0 0.0
        %491 = vmatpush1.msra.mxu0 0.0
        %492 = vmatprep.subr.mxu0 0.0
        %493 = vmatpush1.msra.mxu0 0.0
        %494 = vmatprep.subr.mxu0 0.0
        %495 = vmatpush1.msra.mxu0 0.0
        %496 = vmatprep.subr.mxu0 0.0
        %497 = vmatpush1.msra.mxu0 0.0
        %498 = vmatprep.subr.mxu0 0.0
        %499 = vmatpush1.msra.mxu0 0.0
        %500 = vmatprep.subr.mxu0 0.0
        %501 = vmatpush1.msra.mxu0 %v468
        %502 = vmatprep.subr.mxu0 0.0
        %503 = vmatpush2.msra.mxu0 0.0
        %504 = vmatprep.subr.mxu0 0.0
        %505 = vmatpush2.msra.mxu0 0.0
        %506 = vmatprep.subr.mxu0 0.0
        %507 = vmatpush2.msra.mxu0 0.0
        %508 = vmatprep.subr.mxu0 0.0
        %509 = vmatpush2.msra.mxu0 0.0
        %510 = vmatprep.subr.mxu0 0.0
        %511 = vmatpush2.msra.mxu0 0.0
        %512 = vmatprep.subr.mxu0 0.0
        %513 = vmatpush2.msra.mxu0 0.0
        %514 = vmatprep.subr.mxu0 0.0
        %515 = vmatpush2.msra.mxu0 0.0
        %516 = vmatprep.subr.mxu0 0.0
        %517 = vmatpush2.msra.mxu0 0.0
        %518 = vmatprep.subr.mxu0 0.0
        %519 = vmatpush2.msra.mxu0 0.0
        %520 = vmatprep.subr.mxu0 0.0
        %521 = vmatpush2.msra.mxu0 0.0
        %522 = vmatprep.subr.mxu0 0.0
        %523 = vmatpush2.msra.mxu0 0.0
        %524 = vmatprep.subr.mxu0 0.0
        %525 = vmatpush2.msra.mxu0 0.0
        %526 = vmatprep.subr.mxu0 0.0
        %527 = vmatpush2.msra.mxu0 0.0
        %528 = vmatprep.subr.mxu0 0.0
        %529 = vmatpush2.msra.mxu0 0.0
        %530 = vmatprep.subr.mxu0 0.0
        %531 = vmatpush2.msra.mxu0 0.0
        %532 = vmatprep.subr.mxu0 0.0
        %533 = vmatpush2.msra.mxu0 0.0
        %534 = vmatprep.mubr.f32.mxu0 0.0
        %535 = vmatmul.mubr.f32.gmra.mxu0 %v466
        %v536 = vpop.f32.mrf.mxu0
        %v537 = vadd.f32 0.0, %v536
        %v538 = vpop.f32.mrf.mxu0
        %539 = vdwg.mxu0
        %v540 = vadd.f32 %v458, %v537
        %s541 = scalar_lea.vmem %s3, 24
        %v542 = vld [vmem:[%s541] sm:$0xff]
        %543 = vrot.lane.b32.xlu0 %v302, 122
        %v544 = vpop.permute.xlu0 %543
        %v546 = vsel %vm309, %v542, 0
        %v548 = vsel %vm313, %v544, 0
        %550 = vmatprep.subr.mxu0 0.0
        %551 = vmatpush1.msra.mxu0 0.0
        %552 = vmatprep.subr.mxu0 0.0
        %553 = vmatpush1.msra.mxu0 0.0
        %554 = vmatprep.subr.mxu0 0.0
        %555 = vmatpush1.msra.mxu0 0.0
        %556 = vmatprep.subr.mxu0 0.0
        %557 = vmatpush1.msra.mxu0 0.0
        %558 = vmatprep.subr.mxu0 0.0
        %559 = vmatpush1.msra.mxu0 0.0
        %560 = vmatprep.subr.mxu0 0.0
        %561 = vmatpush1.msra.mxu0 0.0
        %562 = vmatprep.subr.mxu0 0.0
        %563 = vmatpush1.msra.mxu0 0.0
        %564 = vmatprep.subr.mxu0 0.0
        %565 = vmatpush1.msra.mxu0 0.0
        %566 = vmatprep.subr.mxu0 0.0
        %567 = vmatpush1.msra.mxu0 0.0
        %568 = vmatprep.subr.mxu0 0.0
        %569 = vmatpush1.msra.mxu0 0.0
        %570 = vmatprep.subr.mxu0 0.0
        %571 = vmatpush1.msra.mxu0 0.0
        %572 = vmatprep.subr.mxu0 0.0
        %573 = vmatpush1.msra.mxu0 0.0
        %574 = vmatprep.subr.mxu0 0.0
        %575 = vmatpush1.msra.mxu0 0.0
        %576 = vmatprep.subr.mxu0 0.0
        %577 = vmatpush1.msra.mxu0 0.0
        %578 = vmatprep.subr.mxu0 0.0
        %579 = vmatpush1.msra.mxu0 0.0
        %580 = vmatprep.subr.mxu0 0.0
        %581 = vmatpush1.msra.mxu0 %v548
        %582 = vmatprep.subr.mxu0 0.0
        %583 = vmatpush2.msra.mxu0 0.0
        %584 = vmatprep.subr.mxu0 0.0
        %585 = vmatpush2.msra.mxu0 0.0
        %586 = vmatprep.subr.mxu0 0.0
        %587 = vmatpush2.msra.mxu0 0.0
        %588 = vmatprep.subr.mxu0 0.0
        %589 = vmatpush2.msra.mxu0 0.0
        %590 = vmatprep.subr.mxu0 0.0
        %591 = vmatpush2.msra.mxu0 0.0
        %592 = vmatprep.subr.mxu0 0.0
        %593 = vmatpush2.msra.mxu0 0.0
        %594 = vmatprep.subr.mxu0 0.0
        %595 = vmatpush2.msra.mxu0 0.0
        %596 = vmatprep.subr.mxu0 0.0
        %597 = vmatpush2.msra.mxu0 0.0
        %598 = vmatprep.subr.mxu0 0.0
        %599 = vmatpush2.msra.mxu0 0.0
        %600 = vmatprep.subr.mxu0 0.0
        %601 = vmatpush2.msra.mxu0 0.0
        %602 = vmatprep.subr.mxu0 0.0
        %603 = vmatpush2.msra.mxu0 0.0
        %604 = vmatprep.subr.mxu0 0.0
        %605 = vmatpush2.msra.mxu0 0.0
        %606 = vmatprep.subr.mxu0 0.0
        %607 = vmatpush2.msra.mxu0 0.0
        %608 = vmatprep.subr.mxu0 0.0
        %609 = vmatpush2.msra.mxu0 0.0
        %610 = vmatprep.subr.mxu0 0.0
        %611 = vmatpush2.msra.mxu0 0.0
        %612 = vmatprep.subr.mxu0 0.0
        %613 = vmatpush2.msra.mxu0 0.0
        %614 = vmatprep.mubr.f32.mxu0 0.0
        %615 = vmatmul.mubr.f32.gmra.mxu0 %v546
        %v616 = vpop.f32.mrf.mxu0
        %v617 = vadd.f32 0.0, %v616
        %v618 = vpop.f32.mrf.mxu0
        %619 = vdwg.mxu0
        %v620 = vadd.f32 %v540, %v617
        %v621 = vld [vmem:[%s4] sm:$0xff]
        %623 = vset.pattern.permute.xlu0 0
        %624 = vperm.xlu0 %623, %v621
        %v625 = vpop.permute.xlu0 %624
        %v627 = vadd.f32 %v620, %v625
        %v628 = vmax.f32 %v627, 0.0
        %v629 = vld [vmem:[%s5] sm:$0xff]
        %v630 = vld [vmem:[%s5 + $0x8] sm:$0xff]
        %s631 = scalar_lea.vmem %s5, 16
        %v632 = vld [vmem:[%s631] sm:$0xff]
        %v633 = vld [vmem:[%s631 + $0x8] sm:$0xff]
        %635 = vrot.lane.b32.xlu0 %v628, 124
        %v636 = vpop.permute.xlu0 %635
        %vm638 = vcmask 64512
        %v640 = vsel %vm638, %v632, 0
        %v643 = vsel %vm638, %v633, 0
        %645 = vmatprep.subr.mxu0 0.0
        %646 = vmatpush1.msra.mxu0 0.0
        %647 = vmatprep.subr.mxu0 0.0
        %648 = vmatpush1.msra.mxu0 0.0
        %649 = vmatprep.subr.mxu0 0.0
        %650 = vmatpush1.msra.mxu0 0.0
        %651 = vmatprep.subr.mxu0 0.0
        %652 = vmatpush1.msra.mxu0 0.0
        %653 = vmatprep.subr.mxu0 0.0
        %654 = vmatpush1.msra.mxu0 0.0
        %655 = vmatprep.subr.mxu0 0.0
        %656 = vmatpush1.msra.mxu0 0.0
        %657 = vmatprep.subr.mxu0 0.0
        %658 = vmatpush1.msra.mxu0 0.0
        %659 = vmatprep.subr.mxu0 0.0
        %660 = vmatpush1.msra.mxu0 0.0
        %661 = vmatprep.subr.mxu0 0.0
        %662 = vmatpush1.msra.mxu0 0.0
        %663 = vmatprep.subr.mxu0 0.0
        %664 = vmatpush1.msra.mxu0 0.0
        %665 = vmatprep.subr.mxu0 0.0
        %666 = vmatpush1.msra.mxu0 0.0
        %667 = vmatprep.subr.mxu0 0.0
        %668 = vmatpush1.msra.mxu0 0.0
        %669 = vmatprep.subr.mxu0 0.0
        %670 = vmatpush1.msra.mxu0 0.0
        %671 = vmatprep.subr.mxu0 0.0
        %672 = vmatpush1.msra.mxu0 0.0
        %673 = vmatprep.subr.mxu0 0.0
        %674 = vmatpush1.msra.mxu0 0.0
        %675 = vmatprep.subr.mxu0 0.0
        %676 = vmatpush1.msra.mxu0 %v636
        %677 = vmatprep.subr.mxu0 0.0
        %678 = vmatpush2.msra.mxu0 0.0
        %679 = vmatprep.subr.mxu0 0.0
        %680 = vmatpush2.msra.mxu0 0.0
        %681 = vmatprep.subr.mxu0 0.0
        %682 = vmatpush2.msra.mxu0 0.0
        %683 = vmatprep.subr.mxu0 0.0
        %684 = vmatpush2.msra.mxu0 0.0
        %685 = vmatprep.subr.mxu0 0.0
        %686 = vmatpush2.msra.mxu0 0.0
        %687 = vmatprep.subr.mxu0 0.0
        %688 = vmatpush2.msra.mxu0 0.0
        %689 = vmatprep.subr.mxu0 0.0
        %690 = vmatpush2.msra.mxu0 0.0
        %691 = vmatprep.subr.mxu0 0.0
        %692 = vmatpush2.msra.mxu0 0.0
        %693 = vmatprep.subr.mxu0 0.0
        %694 = vmatpush2.msra.mxu0 0.0
        %695 = vmatprep.subr.mxu0 0.0
        %696 = vmatpush2.msra.mxu0 0.0
        %697 = vmatprep.subr.mxu0 0.0
        %698 = vmatpush2.msra.mxu0 0.0
        %699 = vmatprep.subr.mxu0 0.0
        %700 = vmatpush2.msra.mxu0 0.0
        %701 = vmatprep.subr.mxu0 0.0
        %702 = vmatpush2.msra.mxu0 0.0
        %703 = vmatprep.subr.mxu0 0.0
        %704 = vmatpush2.msra.mxu0 0.0
        %705 = vmatprep.subr.mxu0 0.0
        %706 = vmatpush2.msra.mxu0 0.0
        %707 = vmatprep.subr.mxu0 0.0
        %708 = vmatpush2.msra.mxu0 0.0
        %709 = vmatprep.mubr.f32.mxu0 0.0
        %710 = vmatmul.mubr.f32.gmra.mxu0 %v640
        %v711 = vpop.f32.mrf.mxu0
        %v712 = vadd.f32 0.0, %v711
        %v713 = vpop.f32.mrf.mxu0
        %714 = vmatprep.mubr.f32.mxu0 0.0
        %715 = vmatmul.mubr.f32.gmra.mxu0 %v643
        %v716 = vpop.f32.mrf.mxu0
        %v717 = vadd.f32 0.0, %v716
        %v718 = vpop.f32.mrf.mxu0
        %719 = vdwg.mxu0
        %v721 = vsel %vm638, %v629, 0
        %v724 = vsel %vm638, %v630, 0
        %726 = vmatprep.subr.mxu0 0.0
        %727 = vmatpush1.msra.mxu0 0.0
        %728 = vmatprep.subr.mxu0 0.0
        %729 = vmatpush1.msra.mxu0 0.0
        %730 = vmatprep.subr.mxu0 0.0
        %731 = vmatpush1.msra.mxu0 0.0
        %732 = vmatprep.subr.mxu0 0.0
        %733 = vmatpush1.msra.mxu0 0.0
        %734 = vmatprep.subr.mxu0 0.0
        %735 = vmatpush1.msra.mxu0 0.0
        %736 = vmatprep.subr.mxu0 0.0
        %737 = vmatpush1.msra.mxu0 0.0
        %738 = vmatprep.subr.mxu0 0.0
        %739 = vmatpush1.msra.mxu0 0.0
        %740 = vmatprep.subr.mxu0 0.0
        %741 = vmatpush1.msra.mxu0 0.0
        %742 = vmatprep.subr.mxu0 0.0
        %743 = vmatpush1.msra.mxu0 0.0
        %744 = vmatprep.subr.mxu0 0.0
        %745 = vmatpush1.msra.mxu0 0.0
        %746 = vmatprep.subr.mxu0 0.0
        %747 = vmatpush1.msra.mxu0 0.0
        %748 = vmatprep.subr.mxu0 0.0
        %749 = vmatpush1.msra.mxu0 0.0
        %750 = vmatprep.subr.mxu0 0.0
        %751 = vmatpush1.msra.mxu0 0.0
        %752 = vmatprep.subr.mxu0 0.0
        %753 = vmatpush1.msra.mxu0 0.0
        %754 = vmatprep.subr.mxu0 0.0
        %755 = vmatpush1.msra.mxu0 0.0
        %756 = vmatprep.subr.mxu0 0.0
        %757 = vmatpush1.msra.mxu0 %v628
        %758 = vmatprep.subr.mxu0 0.0
        %759 = vmatpush2.msra.mxu0 0.0
        %760 = vmatprep.subr.mxu0 0.0
        %761 = vmatpush2.msra.mxu0 0.0
        %762 = vmatprep.subr.mxu0 0.0
        %763 = vmatpush2.msra.mxu0 0.0
        %764 = vmatprep.subr.mxu0 0.0
        %765 = vmatpush2.msra.mxu0 0.0
        %766 = vmatprep.subr.mxu0 0.0
        %767 = vmatpush2.msra.mxu0 0.0
        %768 = vmatprep.subr.mxu0 0.0
        %769 = vmatpush2.msra.mxu0 0.0
        %770 = vmatprep.subr.mxu0 0.0
        %771 = vmatpush2.msra.mxu0 0.0
        %772 = vmatprep.subr.mxu0 0.0
        %773 = vmatpush2.msra.mxu0 0.0
        %774 = vmatprep.subr.mxu0 0.0
        %775 = vmatpush2.msra.mxu0 0.0
        %776 = vmatprep.subr.mxu0 0.0
        %777 = vmatpush2.msra.mxu0 0.0
        %778 = vmatprep.subr.mxu0 0.0
        %779 = vmatpush2.msra.mxu0 0.0
        %780 = vmatprep.subr.mxu0 0.0
        %781 = vmatpush2.msra.mxu0 0.0
        %782 = vmatprep.subr.mxu0 0.0
        %783 = vmatpush2.msra.mxu0 0.0
        %784 = vmatprep.subr.mxu0 0.0
        %785 = vmatpush2.msra.mxu0 0.0
        %786 = vmatprep.subr.mxu0 0.0
        %787 = vmatpush2.msra.mxu0 0.0
        %788 = vmatprep.subr.mxu0 0.0
        %789 = vmatpush2.msra.mxu0 0.0
        %790 = vmatprep.mubr.f32.mxu0 0.0
        %791 = vmatmul.mubr.f32.gmra.mxu0 %v721
        %v792 = vpop.f32.mrf.mxu0
        %v793 = vadd.f32 %v712, %v792
        %v794 = vpop.f32.mrf.mxu0
        %795 = vmatprep.mubr.f32.mxu0 0.0
        %796 = vmatmul.mubr.f32.gmra.mxu0 %v724
        %v797 = vpop.f32.mrf.mxu0
        %v798 = vadd.f32 %v717, %v797
        %v799 = vpop.f32.mrf.mxu0
        %800 = vdwg.mxu0
        %s801 = scalar_lea.vmem %s5, 32
        %v802 = vld [vmem:[%s801] sm:$0xff]
        %v803 = vld [vmem:[%s801 + $0x8] sm:$0xff]
        %804 = vrot.lane.b32.xlu0 %v628, 120
        %v805 = vpop.permute.xlu0 %804
        %v808 = vsel %vm638, %v802, 0
        %v811 = vsel %vm638, %v803, 0
        %813 = vmatprep.subr.mxu0 0.0
        %814 = vmatpush1.msra.mxu0 0.0
        %815 = vmatprep.subr.mxu0 0.0
        %816 = vmatpush1.msra.mxu0 0.0
        %817 = vmatprep.subr.mxu0 0.0
        %818 = vmatpush1.msra.mxu0 0.0
        %819 = vmatprep.subr.mxu0 0.0
        %820 = vmatpush1.msra.mxu0 0.0
        %821 = vmatprep.subr.mxu0 0.0
        %822 = vmatpush1.msra.mxu0 0.0
        %823 = vmatprep.subr.mxu0 0.0
        %824 = vmatpush1.msra.mxu0 0.0
        %825 = vmatprep.subr.mxu0 0.0
        %826 = vmatpush1.msra.mxu0 0.0
        %827 = vmatprep.subr.mxu0 0.0
        %828 = vmatpush1.msra.mxu0 0.0
        %829 = vmatprep.subr.mxu0 0.0
        %830 = vmatpush1.msra.mxu0 0.0
        %831 = vmatprep.subr.mxu0 0.0
        %832 = vmatpush1.msra.mxu0 0.0
        %833 = vmatprep.subr.mxu0 0.0
        %834 = vmatpush1.msra.mxu0 0.0
        %835 = vmatprep.subr.mxu0 0.0
        %836 = vmatpush1.msra.mxu0 0.0
        %837 = vmatprep.subr.mxu0 0.0
        %838 = vmatpush1.msra.mxu0 0.0
        %839 = vmatprep.subr.mxu0 0.0
        %840 = vmatpush1.msra.mxu0 0.0
        %841 = vmatprep.subr.mxu0 0.0
        %842 = vmatpush1.msra.mxu0 0.0
        %843 = vmatprep.subr.mxu0 0.0
        %844 = vmatpush1.msra.mxu0 %v805
        %845 = vmatprep.subr.mxu0 0.0
        %846 = vmatpush2.msra.mxu0 0.0
        %847 = vmatprep.subr.mxu0 0.0
        %848 = vmatpush2.msra.mxu0 0.0
        %849 = vmatprep.subr.mxu0 0.0
        %850 = vmatpush2.msra.mxu0 0.0
        %851 = vmatprep.subr.mxu0 0.0
        %852 = vmatpush2.msra.mxu0 0.0
        %853 = vmatprep.subr.mxu0 0.0
        %854 = vmatpush2.msra.mxu0 0.0
        %855 = vmatprep.subr.mxu0 0.0
        %856 = vmatpush2.msra.mxu0 0.0
        %857 = vmatprep.subr.mxu0 0.0
        %858 = vmatpush2.msra.mxu0 0.0
        %859 = vmatprep.subr.mxu0 0.0
        %860 = vmatpush2.msra.mxu0 0.0
        %861 = vmatprep.subr.mxu0 0.0
        %862 = vmatpush2.msra.mxu0 0.0
        %863 = vmatprep.subr.mxu0 0.0
        %864 = vmatpush2.msra.mxu0 0.0
        %865 = vmatprep.subr.mxu0 0.0
        %866 = vmatpush2.msra.mxu0 0.0
        %867 = vmatprep.subr.mxu0 0.0
        %868 = vmatpush2.msra.mxu0 0.0
        %869 = vmatprep.subr.mxu0 0.0
        %870 = vmatpush2.msra.mxu0 0.0
        %871 = vmatprep.subr.mxu0 0.0
        %872 = vmatpush2.msra.mxu0 0.0
        %873 = vmatprep.subr.mxu0 0.0
        %874 = vmatpush2.msra.mxu0 0.0
        %875 = vmatprep.subr.mxu0 0.0
        %876 = vmatpush2.msra.mxu0 0.0
        %877 = vmatprep.mubr.f32.mxu0 0.0
        %878 = vmatmul.mubr.f32.gmra.mxu0 %v808
        %v879 = vpop.f32.mrf.mxu0
        %v880 = vadd.f32 0.0, %v879
        %v881 = vpop.f32.mrf.mxu0
        %882 = vmatprep.mubr.f32.mxu0 0.0
        %883 = vmatmul.mubr.f32.gmra.mxu0 %v811
        %v884 = vpop.f32.mrf.mxu0
        %v885 = vadd.f32 0.0, %v884
        %v886 = vpop.f32.mrf.mxu0
        %887 = vdwg.mxu0
        %v888 = vadd.f32 %v793, %v880
        %v889 = vadd.f32 %v798, %v885
        %s890 = scalar_lea.vmem %s5, 48
        %v891 = vld [vmem:[%s890] sm:$0xff]
        %v892 = vld [vmem:[%s890 + $0x8] sm:$0xff]
        %893 = vrot.lane.b32.xlu0 %v628, 116
        %v894 = vpop.permute.xlu0 %893
        %v897 = vsel %vm638, %v891, 0
        %v900 = vsel %vm638, %v892, 0
        %902 = vmatprep.subr.mxu0 0.0
        %903 = vmatpush1.msra.mxu0 0.0
        %904 = vmatprep.subr.mxu0 0.0
        %905 = vmatpush1.msra.mxu0 0.0
        %906 = vmatprep.subr.mxu0 0.0
        %907 = vmatpush1.msra.mxu0 0.0
        %908 = vmatprep.subr.mxu0 0.0
        %909 = vmatpush1.msra.mxu0 0.0
        %910 = vmatprep.subr.mxu0 0.0
        %911 = vmatpush1.msra.mxu0 0.0
        %912 = vmatprep.subr.mxu0 0.0
        %913 = vmatpush1.msra.mxu0 0.0
        %914 = vmatprep.subr.mxu0 0.0
        %915 = vmatpush1.msra.mxu0 0.0
        %916 = vmatprep.subr.mxu0 0.0
        %917 = vmatpush1.msra.mxu0 0.0
        %918 = vmatprep.subr.mxu0 0.0
        %919 = vmatpush1.msra.mxu0 0.0
        %920 = vmatprep.subr.mxu0 0.0
        %921 = vmatpush1.msra.mxu0 0.0
        %922 = vmatprep.subr.mxu0 0.0
        %923 = vmatpush1.msra.mxu0 0.0
        %924 = vmatprep.subr.mxu0 0.0
        %925 = vmatpush1.msra.mxu0 0.0
        %926 = vmatprep.subr.mxu0 0.0
        %927 = vmatpush1.msra.mxu0 0.0
        %928 = vmatprep.subr.mxu0 0.0
        %929 = vmatpush1.msra.mxu0 0.0
        %930 = vmatprep.subr.mxu0 0.0
        %931 = vmatpush1.msra.mxu0 0.0
        %932 = vmatprep.subr.mxu0 0.0
        %933 = vmatpush1.msra.mxu0 %v894
        %934 = vmatprep.subr.mxu0 0.0
        %935 = vmatpush2.msra.mxu0 0.0
        %936 = vmatprep.subr.mxu0 0.0
        %937 = vmatpush2.msra.mxu0 0.0
        %938 = vmatprep.subr.mxu0 0.0
        %939 = vmatpush2.msra.mxu0 0.0
        %940 = vmatprep.subr.mxu0 0.0
        %941 = vmatpush2.msra.mxu0 0.0
        %942 = vmatprep.subr.mxu0 0.0
        %943 = vmatpush2.msra.mxu0 0.0
        %944 = vmatprep.subr.mxu0 0.0
        %945 = vmatpush2.msra.mxu0 0.0
        %946 = vmatprep.subr.mxu0 0.0
        %947 = vmatpush2.msra.mxu0 0.0
        %948 = vmatprep.subr.mxu0 0.0
        %949 = vmatpush2.msra.mxu0 0.0
        %950 = vmatprep.subr.mxu0 0.0
        %951 = vmatpush2.msra.mxu0 0.0
        %952 = vmatprep.subr.mxu0 0.0
        %953 = vmatpush2.msra.mxu0 0.0
        %954 = vmatprep.subr.mxu0 0.0
        %955 = vmatpush2.msra.mxu0 0.0
        %956 = vmatprep.subr.mxu0 0.0
        %957 = vmatpush2.msra.mxu0 0.0
        %958 = vmatprep.subr.mxu0 0.0
        %959 = vmatpush2.msra.mxu0 0.0
        %960 = vmatprep.subr.mxu0 0.0
        %961 = vmatpush2.msra.mxu0 0.0
        %962 = vmatprep.subr.mxu0 0.0
        %963 = vmatpush2.msra.mxu0 0.0
        %964 = vmatprep.subr.mxu0 0.0
        %965 = vmatpush2.msra.mxu0 0.0
        %966 = vmatprep.mubr.f32.mxu0 0.0
        %967 = vmatmul.mubr.f32.gmra.mxu0 %v897
        %v968 = vpop.f32.mrf.mxu0
        %v969 = vadd.f32 0.0, %v968
        %v970 = vpop.f32.mrf.mxu0
        %971 = vmatprep.mubr.f32.mxu0 0.0
        %972 = vmatmul.mubr.f32.gmra.mxu0 %v900
        %v973 = vpop.f32.mrf.mxu0
        %v974 = vadd.f32 0.0, %v973
        %v975 = vpop.f32.mrf.mxu0
        %976 = vdwg.mxu0
        %v977 = vadd.f32 %v888, %v969
        %v978 = vadd.f32 %v889, %v974
        %s979 = scalar_lea.vmem %s5, 64
        %v980 = vld [vmem:[%s979] sm:$0xff]
        %v981 = vld [vmem:[%s979 + $0x8] sm:$0xff]
        %982 = vrot.lane.b32.xlu0 %v628, 112
        %v983 = vpop.permute.xlu0 %982
        %v986 = vsel %vm638, %v980, 0
        %v989 = vsel %vm638, %v981, 0
        %991 = vmatprep.subr.mxu0 0.0
        %992 = vmatpush1.msra.mxu0 0.0
        %993 = vmatprep.subr.mxu0 0.0
        %994 = vmatpush1.msra.mxu0 0.0
        %995 = vmatprep.subr.mxu0 0.0
        %996 = vmatpush1.msra.mxu0 0.0
        %997 = vmatprep.subr.mxu0 0.0
        %998 = vmatpush1.msra.mxu0 0.0
        %999 = vmatprep.subr.mxu0 0.0
        %1000 = vmatpush1.msra.mxu0 0.0
        %1001 = vmatprep.subr.mxu0 0.0
        %1002 = vmatpush1.msra.mxu0 0.0
        %1003 = vmatprep.subr.mxu0 0.0
        %1004 = vmatpush1.msra.mxu0 0.0
        %1005 = vmatprep.subr.mxu0 0.0
        %1006 = vmatpush1.msra.mxu0 0.0
        %1007 = vmatprep.subr.mxu0 0.0
        %1008 = vmatpush1.msra.mxu0 0.0
        %1009 = vmatprep.subr.mxu0 0.0
        %1010 = vmatpush1.msra.mxu0 0.0
        %1011 = vmatprep.subr.mxu0 0.0
        %1012 = vmatpush1.msra.mxu0 0.0
        %1013 = vmatprep.subr.mxu0 0.0
        %1014 = vmatpush1.msra.mxu0 0.0
        %1015 = vmatprep.subr.mxu0 0.0
        %1016 = vmatpush1.msra.mxu0 0.0
        %1017 = vmatprep.subr.mxu0 0.0
        %1018 = vmatpush1.msra.mxu0 0.0
        %1019 = vmatprep.subr.mxu0 0.0
        %1020 = vmatpush1.msra.mxu0 0.0
        %1021 = vmatprep.subr.mxu0 0.0
        %1022 = vmatpush1.msra.mxu0 %v983
        %1023 = vmatprep.subr.mxu0 0.0
        %1024 = vmatpush2.msra.mxu0 0.0
        %1025 = vmatprep.subr.mxu0 0.0
        %1026 = vmatpush2.msra.mxu0 0.0
        %1027 = vmatprep.subr.mxu0 0.0
        %1028 = vmatpush2.msra.mxu0 0.0
        %1029 = vmatprep.subr.mxu0 0.0
        %1030 = vmatpush2.msra.mxu0 0.0
        %1031 = vmatprep.subr.mxu0 0.0
        %1032 = vmatpush2.msra.mxu0 0.0
        %1033 = vmatprep.subr.mxu0 0.0
        %1034 = vmatpush2.msra.mxu0 0.0
        %1035 = vmatprep.subr.mxu0 0.0
        %1036 = vmatpush2.msra.mxu0 0.0
        %1037 = vmatprep.subr.mxu0 0.0
        %1038 = vmatpush2.msra.mxu0 0.0
        %1039 = vmatprep.subr.mxu0 0.0
        %1040 = vmatpush2.msra.mxu0 0.0
        %1041 = vmatprep.subr.mxu0 0.0
        %1042 = vmatpush2.msra.mxu0 0.0
        %1043 = vmatprep.subr.mxu0 0.0
        %1044 = vmatpush2.msra.mxu0 0.0
        %1045 = vmatprep.subr.mxu0 0.0
        %1046 = vmatpush2.msra.mxu0 0.0
        %1047 = vmatprep.subr.mxu0 0.0
        %1048 = vmatpush2.msra.mxu0 0.0
        %1049 = vmatprep.subr.mxu0 0.0
        %1050 = vmatpush2.msra.mxu0 0.0
        %1051 = vmatprep.subr.mxu0 0.0
        %1052 = vmatpush2.msra.mxu0 0.0
        %1053 = vmatprep.subr.mxu0 0.0
        %1054 = vmatpush2.msra.mxu0 0.0
        %1055 = vmatprep.mubr.f32.mxu0 0.0
        %1056 = vmatmul.mubr.f32.gmra.mxu0 %v986
        %v1057 = vpop.f32.mrf.mxu0
        %v1058 = vadd.f32 0.0, %v1057
        %v1059 = vpop.f32.mrf.mxu0
        %1060 = vmatprep.mubr.f32.mxu0 0.0
        %1061 = vmatmul.mubr.f32.gmra.mxu0 %v989
        %v1062 = vpop.f32.mrf.mxu0
        %v1063 = vadd.f32 0.0, %v1062
        %v1064 = vpop.f32.mrf.mxu0
        %1065 = vdwg.mxu0
        %v1066 = vadd.f32 %v977, %v1058
        %v1067 = vadd.f32 %v978, %v1063
        %s1068 = scalar_lea.vmem %s5, 80
        %v1069 = vld [vmem:[%s1068] sm:$0xff]
        %v1070 = vld [vmem:[%s1068 + $0x8] sm:$0xff]
        %1071 = vrot.lane.b32.xlu0 %v628, 108
        %v1072 = vpop.permute.xlu0 %1071
        %v1075 = vsel %vm638, %v1069, 0
        %v1078 = vsel %vm638, %v1070, 0
        %1080 = vmatprep.subr.mxu0 0.0
        %1081 = vmatpush1.msra.mxu0 0.0
        %1082 = vmatprep.subr.mxu0 0.0
        %1083 = vmatpush1.msra.mxu0 0.0
        %1084 = vmatprep.subr.mxu0 0.0
        %1085 = vmatpush1.msra.mxu0 0.0
        %1086 = vmatprep.subr.mxu0 0.0
        %1087 = vmatpush1.msra.mxu0 0.0
        %1088 = vmatprep.subr.mxu0 0.0
        %1089 = vmatpush1.msra.mxu0 0.0
        %1090 = vmatprep.subr.mxu0 0.0
        %1091 = vmatpush1.msra.mxu0 0.0
        %1092 = vmatprep.subr.mxu0 0.0
        %1093 = vmatpush1.msra.mxu0 0.0
        %1094 = vmatprep.subr.mxu0 0.0
        %1095 = vmatpush1.msra.mxu0 0.0
        %1096 = vmatprep.subr.mxu0 0.0
        %1097 = vmatpush1.msra.mxu0 0.0
        %1098 = vmatprep.subr.mxu0 0.0
        %1099 = vmatpush1.msra.mxu0 0.0
        %1100 = vmatprep.subr.mxu0 0.0
        %1101 = vmatpush1.msra.mxu0 0.0
        %1102 = vmatprep.subr.mxu0 0.0
        %1103 = vmatpush1.msra.mxu0 0.0
        %1104 = vmatprep.subr.mxu0 0.0
        %1105 = vmatpush1.msra.mxu0 0.0
        %1106 = vmatprep.subr.mxu0 0.0
        %1107 = vmatpush1.msra.mxu0 0.0
        %1108 = vmatprep.subr.mxu0 0.0
        %1109 = vmatpush1.msra.mxu0 0.0
        %1110 = vmatprep.subr.mxu0 0.0
        %1111 = vmatpush1.msra.mxu0 %v1072
        %1112 = vmatprep.subr.mxu0 0.0
        %1113 = vmatpush2.msra.mxu0 0.0
        %1114 = vmatprep.subr.mxu0 0.0
        %1115 = vmatpush2.msra.mxu0 0.0
        %1116 = vmatprep.subr.mxu0 0.0
        %1117 = vmatpush2.msra.mxu0 0.0
        %1118 = vmatprep.subr.mxu0 0.0
        %1119 = vmatpush2.msra.mxu0 0.0
        %1120 = vmatprep.subr.mxu0 0.0
        %1121 = vmatpush2.msra.mxu0 0.0
        %1122 = vmatprep.subr.mxu0 0.0
        %1123 = vmatpush2.msra.mxu0 0.0
        %1124 = vmatprep.subr.mxu0 0.0
        %1125 = vmatpush2.msra.mxu0 0.0
        %1126 = vmatprep.subr.mxu0 0.0
        %1127 = vmatpush2.msra.mxu0 0.0
        %1128 = vmatprep.subr.mxu0 0.0
        %1129 = vmatpush2.msra.mxu0 0.0
        %1130 = vmatprep.subr.mxu0 0.0
        %1131 = vmatpush2.msra.mxu0 0.0
        %1132 = vmatprep.subr.mxu0 0.0
        %1133 = vmatpush2.msra.mxu0 0.0
        %1134 = vmatprep.subr.mxu0 0.0
        %1135 = vmatpush2.msra.mxu0 0.0
        %1136 = vmatprep.subr.mxu0 0.0
        %1137 = vmatpush2.msra.mxu0 0.0
        %1138 = vmatprep.subr.mxu0 0.0
        %1139 = vmatpush2.msra.mxu0 0.0
        %1140 = vmatprep.subr.mxu0 0.0
        %1141 = vmatpush2.msra.mxu0 0.0
        %1142 = vmatprep.subr.mxu0 0.0
        %1143 = vmatpush2.msra.mxu0 0.0
        %1144 = vmatprep.mubr.f32.mxu0 0.0
        %1145 = vmatmul.mubr.f32.gmra.mxu0 %v1075
        %v1146 = vpop.f32.mrf.mxu0
        %v1147 = vadd.f32 0.0, %v1146
        %v1148 = vpop.f32.mrf.mxu0
        %1149 = vmatprep.mubr.f32.mxu0 0.0
        %1150 = vmatmul.mubr.f32.gmra.mxu0 %v1078
        %v1151 = vpop.f32.mrf.mxu0
        %v1152 = vadd.f32 0.0, %v1151
        %v1153 = vpop.f32.mrf.mxu0
        %1154 = vdwg.mxu0
        %v1155 = vadd.f32 %v1066, %v1147
        %v1156 = vadd.f32 %v1067, %v1152
        %s1157 = scalar_lea.vmem %s5, 96
        %v1158 = vld [vmem:[%s1157] sm:$0xff]
        %v1159 = vld [vmem:[%s1157 + $0x8] sm:$0xff]
        %1160 = vrot.lane.b32.xlu0 %v628, 104
        %v1161 = vpop.permute.xlu0 %1160
        %v1164 = vsel %vm638, %v1158, 0
        %v1167 = vsel %vm638, %v1159, 0
        %1169 = vmatprep.subr.mxu0 0.0
        %1170 = vmatpush1.msra.mxu0 0.0
        %1171 = vmatprep.subr.mxu0 0.0
        %1172 = vmatpush1.msra.mxu0 0.0
        %1173 = vmatprep.subr.mxu0 0.0
        %1174 = vmatpush1.msra.mxu0 0.0
        %1175 = vmatprep.subr.mxu0 0.0
        %1176 = vmatpush1.msra.mxu0 0.0
        %1177 = vmatprep.subr.mxu0 0.0
        %1178 = vmatpush1.msra.mxu0 0.0
        %1179 = vmatprep.subr.mxu0 0.0
        %1180 = vmatpush1.msra.mxu0 0.0
        %1181 = vmatprep.subr.mxu0 0.0
        %1182 = vmatpush1.msra.mxu0 0.0
        %1183 = vmatprep.subr.mxu0 0.0
        %1184 = vmatpush1.msra.mxu0 0.0
        %1185 = vmatprep.subr.mxu0 0.0
        %1186 = vmatpush1.msra.mxu0 0.0
        %1187 = vmatprep.subr.mxu0 0.0
        %1188 = vmatpush1.msra.mxu0 0.0
        %1189 = vmatprep.subr.mxu0 0.0
        %1190 = vmatpush1.msra.mxu0 0.0
        %1191 = vmatprep.subr.mxu0 0.0
        %1192 = vmatpush1.msra.mxu0 0.0
        %1193 = vmatprep.subr.mxu0 0.0
        %1194 = vmatpush1.msra.mxu0 0.0
        %1195 = vmatprep.subr.mxu0 0.0
        %1196 = vmatpush1.msra.mxu0 0.0
        %1197 = vmatprep.subr.mxu0 0.0
        %1198 = vmatpush1.msra.mxu0 0.0
        %1199 = vmatprep.subr.mxu0 0.0
        %1200 = vmatpush1.msra.mxu0 %v1161
        %1201 = vmatprep.subr.mxu0 0.0
        %1202 = vmatpush2.msra.mxu0 0.0
        %1203 = vmatprep.subr.mxu0 0.0
        %1204 = vmatpush2.msra.mxu0 0.0
        %1205 = vmatprep.subr.mxu0 0.0
        %1206 = vmatpush2.msra.mxu0 0.0
        %1207 = vmatprep.subr.mxu0 0.0
        %1208 = vmatpush2.msra.mxu0 0.0
        %1209 = vmatprep.subr.mxu0 0.0
        %1210 = vmatpush2.msra.mxu0 0.0
        %1211 = vmatprep.subr.mxu0 0.0
        %1212 = vmatpush2.msra.mxu0 0.0
        %1213 = vmatprep.subr.mxu0 0.0
        %1214 = vmatpush2.msra.mxu0 0.0
        %1215 = vmatprep.subr.mxu0 0.0
        %1216 = vmatpush2.msra.mxu0 0.0
        %1217 = vmatprep.subr.mxu0 0.0
        %1218 = vmatpush2.msra.mxu0 0.0
        %1219 = vmatprep.subr.mxu0 0.0
        %1220 = vmatpush2.msra.mxu0 0.0
        %1221 = vmatprep.subr.mxu0 0.0
        %1222 = vmatpush2.msra.mxu0 0.0
        %1223 = vmatprep.subr.mxu0 0.0
        %1224 = vmatpush2.msra.mxu0 0.0
        %1225 = vmatprep.subr.mxu0 0.0
        %1226 = vmatpush2.msra.mxu0 0.0
        %1227 = vmatprep.subr.mxu0 0.0
        %1228 = vmatpush2.msra.mxu0 0.0
        %1229 = vmatprep.subr.mxu0 0.0
        %1230 = vmatpush2.msra.mxu0 0.0
        %1231 = vmatprep.subr.mxu0 0.0
        %1232 = vmatpush2.msra.mxu0 0.0
        %1233 = vmatprep.mubr.f32.mxu0 0.0
        %1234 = vmatmul.mubr.f32.gmra.mxu0 %v1164
        %v1235 = vpop.f32.mrf.mxu0
        %v1236 = vadd.f32 0.0, %v1235
        %v1237 = vpop.f32.mrf.mxu0
        %1238 = vmatprep.mubr.f32.mxu0 0.0
        %1239 = vmatmul.mubr.f32.gmra.mxu0 %v1167
        %v1240 = vpop.f32.mrf.mxu0
        %v1241 = vadd.f32 0.0, %v1240
        %v1242 = vpop.f32.mrf.mxu0
        %1243 = vdwg.mxu0
        %v1244 = vadd.f32 %v1155, %v1236
        %v1245 = vadd.f32 %v1156, %v1241
        %s1246 = scalar_lea.vmem %s5, 112
        %v1247 = vld [vmem:[%s1246] sm:$0xff]
        %v1248 = vld [vmem:[%s1246 + $0x8] sm:$0xff]
        %1249 = vrot.lane.b32.xlu0 %v628, 100
        %v1250 = vpop.permute.xlu0 %1249
        %v1253 = vsel %vm638, %v1247, 0
        %v1256 = vsel %vm638, %v1248, 0
        %1258 = vmatprep.subr.mxu0 0.0
        %1259 = vmatpush1.msra.mxu0 0.0
        %1260 = vmatprep.subr.mxu0 0.0
        %1261 = vmatpush1.msra.mxu0 0.0
        %1262 = vmatprep.subr.mxu0 0.0
        %1263 = vmatpush1.msra.mxu0 0.0
        %1264 = vmatprep.subr.mxu0 0.0
        %1265 = vmatpush1.msra.mxu0 0.0
        %1266 = vmatprep.subr.mxu0 0.0
        %1267 = vmatpush1.msra.mxu0 0.0
        %1268 = vmatprep.subr.mxu0 0.0
        %1269 = vmatpush1.msra.mxu0 0.0
        %1270 = vmatprep.subr.mxu0 0.0
        %1271 = vmatpush1.msra.mxu0 0.0
        %1272 = vmatprep.subr.mxu0 0.0
        %1273 = vmatpush1.msra.mxu0 0.0
        %1274 = vmatprep.subr.mxu0 0.0
        %1275 = vmatpush1.msra.mxu0 0.0
        %1276 = vmatprep.subr.mxu0 0.0
        %1277 = vmatpush1.msra.mxu0 0.0
        %1278 = vmatprep.subr.mxu0 0.0
        %1279 = vmatpush1.msra.mxu0 0.0
        %1280 = vmatprep.subr.mxu0 0.0
        %1281 = vmatpush1.msra.mxu0 0.0
        %1282 = vmatprep.subr.mxu0 0.0
        %1283 = vmatpush1.msra.mxu0 0.0
        %1284 = vmatprep.subr.mxu0 0.0
        %1285 = vmatpush1.msra.mxu0 0.0
        %1286 = vmatprep.subr.mxu0 0.0
        %1287 = vmatpush1.msra.mxu0 0.0
        %1288 = vmatprep.subr.mxu0 0.0
        %1289 = vmatpush1.msra.mxu0 %v1250
        %1290 = vmatprep.subr.mxu0 0.0
        %1291 = vmatpush2.msra.mxu0 0.0
        %1292 = vmatprep.subr.mxu0 0.0
        %1293 = vmatpush2.msra.mxu0 0.0
        %1294 = vmatprep.subr.mxu0 0.0
        %1295 = vmatpush2.msra.mxu0 0.0
        %1296 = vmatprep.subr.mxu0 0.0
        %1297 = vmatpush2.msra.mxu0 0.0
        %1298 = vmatprep.subr.mxu0 0.0
        %1299 = vmatpush2.msra.mxu0 0.0
        %1300 = vmatprep.subr.mxu0 0.0
        %1301 = vmatpush2.msra.mxu0 0.0
        %1302 = vmatprep.subr.mxu0 0.0
        %1303 = vmatpush2.msra.mxu0 0.0
        %1304 = vmatprep.subr.mxu0 0.0
        %1305 = vmatpush2.msra.mxu0 0.0
        %1306 = vmatprep.subr.mxu0 0.0
        %1307 = vmatpush2.msra.mxu0 0.0
        %1308 = vmatprep.subr.mxu0 0.0
        %1309 = vmatpush2.msra.mxu0 0.0
        %1310 = vmatprep.subr.mxu0 0.0
        %1311 = vmatpush2.msra.mxu0 0.0
        %1312 = vmatprep.subr.mxu0 0.0
        %1313 = vmatpush2.msra.mxu0 0.0
        %1314 = vmatprep.subr.mxu0 0.0
        %1315 = vmatpush2.msra.mxu0 0.0
        %1316 = vmatprep.subr.mxu0 0.0
        %1317 = vmatpush2.msra.mxu0 0.0
        %1318 = vmatprep.subr.mxu0 0.0
        %1319 = vmatpush2.msra.mxu0 0.0
        %1320 = vmatprep.subr.mxu0 0.0
        %1321 = vmatpush2.msra.mxu0 0.0
        %1322 = vmatprep.mubr.f32.mxu0 0.0
        %1323 = vmatmul.mubr.f32.gmra.mxu0 %v1253
        %v1324 = vpop.f32.mrf.mxu0
        %v1325 = vadd.f32 0.0, %v1324
        %v1326 = vpop.f32.mrf.mxu0
        %1327 = vmatprep.mubr.f32.mxu0 0.0
        %1328 = vmatmul.mubr.f32.gmra.mxu0 %v1256
        %v1329 = vpop.f32.mrf.mxu0
        %v1330 = vadd.f32 0.0, %v1329
        %v1331 = vpop.f32.mrf.mxu0
        %1332 = vdwg.mxu0
        %v1333 = vadd.f32 %v1244, %v1325
        %v1334 = vadd.f32 %v1245, %v1330
        %v1335 = vld [vmem:[%s6] sm:$0xff]
        %v1336 = vld [vmem:[%s6 + $0x8] sm:$0xff]
        %1338 = vset.pattern.permute.xlu0 0
        %1339 = vperm.xlu0 %1338, %v1335
        %v1340 = vpop.permute.xlu0 %1339
        %1343 = vset.pattern.permute.xlu0 0
        %1344 = vperm.xlu0 %1343, %v1336
        %v1345 = vpop.permute.xlu0 %1344
        %v1347 = vadd.f32 %v1333, %v1340
        %v1348 = vadd.f32 %v1334, %v1345
        %v1349 = vmax.f32 %v1347, 0.0
        %v1350 = vmax.f32 %v1348, 0.0
        %vm1351 = vcmask 523264
        %1352 = vst.msk [vmem:[%s267] sm:$0xff] %vm1351, %v1349
        %1353 = vst.msk [vmem:[%s267 + $0x8] sm:$0xff] %vm1351, %v1350
        %s1354 = sand.u32 %s181, 1
        %s1355 = scalar_lea.sflag [#allocation3], %s1354
        %s1356 = sand.u32 %s181, 1
        %s1357 = smul.addr %s1356, 16
        %s1358 = scalar_lea.vmem [#allocation2], %s1357
        // Predicated region
        $region49: #{tpu_custom_call.1} parent=47 // pred_check
          %p1359 = pneg %p191
        $region50: #{tpu_custom_call.1} parent=47 // pred_check_branch
          %1361 = sbr.rel (%p1359) target = $region52
        $region51: #{tpu_custom_call.1} parent=47 // pred_region
          %s1363 = ssub.s32 256, 256
          %1364 = vsyncadd %s1355, %s1363
          %s1365 = smul.addr %s21, 2
          %s1366 = smul.addr %s1365, 128
          %s1367 = scalar_lea.hbm %s7, %s1366
          %s1368 = sshll.u32 %s1358, 4
          %s1369 = int_to_ptr.vmem [resolvable:$true] %s1368
          %1374 = dma.vmem_to_hbm [thread:$0]  %s1369, 256, %s1367, %s1355, 128, 128, 8
        $region52: #{tpu_custom_call.1} parent=47 // pred_fallthru
          _
      $region48: #{tpu_custom_call.1} parent=5 // pred_fallthru
        _
      %p1375 = scmp.le.s32.totalorder 2, %s16
      // Predicated region
      $region53: #{tpu_custom_call.1} parent=5 // pred_check
        %p1376 = pneg %p1375
      $region54: #{tpu_custom_call.1} parent=5 // pred_check_branch
        %1378 = sbr.rel (%p1376) target = $region56
      $region55: #{tpu_custom_call.1} parent=5 // pred_region
        %s1379 = ssub.s32 %s16, 2
        // Predicated region
        $region57: #{tpu_custom_call.1} parent=55 // pred_check
          %p1380 = pneg %p197
        $region58: #{tpu_custom_call.1} parent=55 // pred_check_branch
          %1382 = sbr.rel (%p1380) target = $region60
        $region59: #{tpu_custom_call.1} parent=55 // pred_region
          %s1383 = sand.u32 %s182, 1
          %s1384 = scalar_lea.sflag [#allocation3], %s1383
          %s1385 = sand.u32 %s182, 1
          %s1386 = smul.addr %s1385, 16
          %s1387 = scalar_lea.vmem [#allocation2], %s1386
          %1388 = dma.done %s1384, 256
        $region60: #{tpu_custom_call.1} parent=55 // pred_fallthru
          _
      $region56: #{tpu_custom_call.1} parent=5 // pred_fallthru
        _
    $region6: #{tpu_custom_call.1} parent=1 // loop_footer
      %s20 = sadd.s32 1, %s16
    $region7: #{tpu_custom_call.1} parent=1 // loop_footer_branch
      %15 = sbr.rel target = $region3
    $region8: #{tpu_custom_call.1} parent=1 // loop_exit
      _
    %1389 = vsyncpa [#allocation3], 1
    %s1390 = scalar_lea.sflag [#allocation3], 1
    %1391 = vsyncpa %s1390, 1

</llo_original>
